<compile_context>
chip_gen: v5e
topology: v5e:2x2
jax: 0.10.0
libtpu: 0.0.40
codegen_flags: <defaults>
</compile_context>

<pallas_src>
import jax
import jax.numpy as jnp
from jax import lax
from jax.experimental import pallas as pl
from jax.experimental.pallas import tpu as pltpu

H_IN, W_IN = 8, 14
C1, C2 = 64, 32
C2P = 64                                        # conv2 out-channels padded for lane alignment
FC1_IN, FC1_OUT = 64, 16
NUM_LABEL = 4
FC2_OUT = NUM_LABEL * 10
OUT_P = 128                                     # fc2 output padded to full lane width
BN_EPS = 1e-5
TB_MAX = 512                                    # batch rows per grid step (mult. of 8)

K1 = H_IN * W_IN                                # 112 (conv1 contraction, rows = (h,w))
K1P = 128                                       # padded to a full lane width
N1 = 9 * 2 * 4 * C1                             # 4608, cols = (si,sj | pi,pj,c)
G1 = N1 // 9                                    # 512-wide pool1 groups
K2 = 2 * 4 * C1                                 # 512, rows = (h,w,ci)
N2P = 4 * 2 * C2P                               # 512, cols = (si,sj | pj,co_pad)
G2 = N2P // 4                                   # 128-wide, lane-aligned pool2 groups


# ----------------------------------------------------------------------------
# Fused kernel: whole network for one batch tile, all intermediates in VMEM.
# ----------------------------------------------------------------------------
def _tree_max(parts):
    while len(parts) > 1:
        nxt = [jnp.maximum(parts[i], parts[i + 1])
               for i in range(0, len(parts) - 1, 2)]
        if len(parts) % 2:
            nxt.append(parts[-1])
        parts = nxt
    return parts[0]


def _net_kernel(x_ref, w1_ref, b1_ref, w2_ref, b2_ref,
                w3_ref, b3_ref, w4_ref, b4_ref, o_ref):
    # conv1 as ONE bf16 MXU matmul (bias + BN shift + ReLU hoisted past pool1).
    a1 = jnp.dot(x_ref[...], w1_ref[...],
                 preferred_element_type=jnp.float32)            # (TB, 4608)
    # MaxPool2d(3,3): 9 lane-aligned (TB, 512) slices, pairwise max tree.
    m1 = _tree_max([a1[:, t * G1:(t + 1) * G1] for t in range(9)])
    h1 = jnp.maximum(m1 + b1_ref[...], 0.0).astype(jnp.bfloat16)  # (TB, 512)

    # conv2 as ONE bf16 MXU matmul (co padded to 64 so pool2 groups are 128 wide).
    a2 = jnp.dot(h1, w2_ref[...],
                 preferred_element_type=jnp.float32)            # (TB, 512)
    m2 = _tree_max([a2[:, t * G2:(t + 1) * G2] for t in range(4)])
    h2 = jnp.maximum(m2 + b2_ref[...], 0.0).astype(jnp.bfloat16)  # (TB, 128)

    # TODO(synk): Dropout(0.2) is eval-mode identity (training-mode RNG masking omitted).

    # fc1 + BatchNorm1d(eval) + ReLU (BN scale and the NCHW C-major flatten
    # permutation are folded into w3; padded channels have zero rows).
    h3 = jnp.dot(h2, w3_ref[...],
                 preferred_element_type=jnp.float32) + b3_ref[...]
    h3 = jnp.maximum(h3, 0.0).astype(jnp.bfloat16)              # (TB, 16)
    # fc2 (output padded to 128 lanes -> unmasked stores).
    o_ref[...] = jnp.dot(h3, w4_ref[...],
                         preferred_element_type=jnp.float32) + b4_ref[...]


# ----------------------------------------------------------------------------
# Wrapper
# ----------------------------------------------------------------------------
def _round_up(x, m):
    return ((x + m - 1) // m) * m


@jax.jit
def net_forward(x_nchw, kp):
    n = x_nchw.shape[0]
    x = x_nchw.reshape(n, K1).astype(jnp.float32)    # (n,1,8,14) -> (n,112), (h,w) major
    # >=2 grid steps when possible so the "parallel" axis feeds both v7x TCs.
    tb = min(TB_MAX, _round_up(max((n + 1) // 2, 1), 8))
    n_pad = _round_up(n, tb)
    x = jnp.pad(x, ((0, n_pad - n), (0, K1P - K1))).astype(jnp.bfloat16)

    out = pl.pallas_call(
        _net_kernel,
        out_shape=jax.ShapeDtypeStruct((n_pad, OUT_P), jnp.float32),
        grid=(n_pad // tb,),
        in_specs=[
            pl.BlockSpec((tb, K1P), lambda b: (b, 0)),           # x tile
            pl.BlockSpec((K1P, N1), lambda b: (0, 0)),           # conv1 expanded weight
            pl.BlockSpec((1, G1), lambda b: (0, 0)),             # conv1 bias row (post-pool)
            pl.BlockSpec((K2, N2P), lambda b: (0, 0)),           # conv2 expanded weight
            pl.BlockSpec((1, G2), lambda b: (0, 0)),             # conv2 bias row (post-pool)
            pl.BlockSpec((G2, FC1_OUT), lambda b: (0, 0)),       # fc1 (+BN) weight
            pl.BlockSpec((1, FC1_OUT), lambda b: (0, 0)),        # fc1 (+BN) bias
            pl.BlockSpec((FC1_OUT, OUT_P), lambda b: (0, 0)),    # fc2 weight (padded)
            pl.BlockSpec((1, OUT_P), lambda b: (0, 0)),          # fc2 bias (padded)
        ],
        out_specs=pl.BlockSpec((tb, OUT_P), lambda b: (b, 0)),
        compiler_params=pltpu.CompilerParams(
            dimension_semantics=("parallel",),
            vmem_limit_bytes=48 * 1024 * 1024),
    )(x, kp["w1big"], kp["b1big"], kp["w2big"], kp["b2big"],
      kp["w3"], kp["b3"], kp["w4"], kp["b4"])

    return out[:n, :FC2_OUT][:, None, :]                          # unsqueeze(1)


# ----------------------------------------------------------------------------
# Parameter preparation (done once): fold BN, expand convs to MXU matmuls,
# pad for lane alignment, cast matmul operands to bf16.
# ----------------------------------------------------------------------------
def build_kernel_params(p):
    # ---- conv1 -> (112, 4608); rows = (h, w), columns = (si, sj | pi, pj, c) ----
    h = jnp.arange(H_IN).reshape(H_IN, 1, 1, 1, 1, 1)
    w = jnp.arange(W_IN).reshape(1, W_IN, 1, 1, 1, 1)
    si = jnp.arange(3).reshape(1, 1, 3, 1, 1, 1)
    sj = jnp.arange(3).reshape(1, 1, 1, 3, 1, 1)
    pi = jnp.arange(2).reshape(1, 1, 1, 1, 2, 1)
    pj = jnp.arange(4).reshape(1, 1, 1, 1, 1, 4)
    kh = h - (pi * 3 + si) + 1                        # pad = 1, out row i = 3*pi+si
    kw = w - (pj * 3 + sj) + 1                        # pad = 1, out col j = 3*pj+sj
    valid = (kh >= 0) & (kh < 5) & (kw >= 0) & (kw < 5)
    taps = p["w1"][jnp.clip(kh, 0, 4), jnp.clip(kw, 0, 4)]       # (8,14,3,3,2,4,64)
    w1big = (jnp.where(valid[..., None], taps, 0.0) * p["s1"]).reshape(K1, N1)
    w1big = jnp.pad(w1big, ((0, K1P - K1), (0, 0))).astype(jnp.bfloat16)
    # bias (per channel c) hoisted past pool1: one (1, 512) row over (pi,pj,c)
    b1big = jnp.tile(p["b1"], G1 // C1).reshape(1, G1)

    # ---- conv2 -> (512, 512); rows = (h, w, ci), cols = (si, sj | pj, co_pad) ----
    h = jnp.arange(2).reshape(2, 1, 1, 1, 1)
    w = jnp.arange(4).reshape(1, 4, 1, 1, 1)
    si = jnp.arange(2).reshape(1, 1, 2, 1, 1)
    sj = jnp.arange(2).reshape(1, 1, 1, 2, 1)
    pj = jnp.arange(2).reshape(1, 1, 1, 1, 2)
    kh = h - si + 1                                   # pad = 1, out row i = si
    kw = w - (pj * 2 + sj) + 1                        # pad = 1, out col j = 2*pj+sj
    valid = (kh >= 0) & (kh < 3) & (kw >= 0) & (kw < 3)
    taps = p["w2"][jnp.clip(kh, 0, 2), jnp.clip(kw, 0, 2)]       # (2,4,2,2,2,64,32)
    w2big = jnp.where(valid[..., None, None], taps, 0.0) * p["s2"]
    w2big = jnp.transpose(w2big, (0, 1, 5, 2, 3, 4, 6))          # (h,w,ci, si,sj,pj, co)
    w2big = jnp.pad(w2big, ((0, 0),) * 6 + ((0, C2P - C2),))     # pad co 32 -> 64
    w2big = w2big.reshape(K2, N2P).astype(jnp.bfloat16)
    # bias (per co) hoisted past pool2: one (1, 128) row over (pj, co_pad)
    b2big = jnp.tile(jnp.pad(p["b2"], (0, C2P - C2)), 2).reshape(1, G2)

    # ---- fc1 (+BN1d folded). Rows laid out to match h2 columns (pj, co_pad);
    #      PyTorch's NCHW C-major flatten index is co*2 + pj. Padded co -> zero rows. ----
    col = jnp.arange(G2)
    pj_i = col // C2P
    co_i = col % C2P
    src = jnp.clip(co_i * 2 + pj_i, 0, FC1_IN - 1)
    w3 = jnp.where((co_i < C2)[:, None],
                   p["fc1_w"][src, :] * p["bn1_s"], 0.0).astype(jnp.bfloat16)
    b3 = (p["bn1_s"] * p["fc1_b"] + p["bn1_b"]).reshape(1, FC1_OUT)

    # ---- fc2 padded to 128 output lanes ----
    w4 = jnp.pad(p["fc2_w"], ((0, 0), (0, OUT_P - FC2_OUT))).astype(jnp.bfloat16)
    b4 = jnp.pad(p["fc2_b"], (0, OUT_P - FC2_OUT)).reshape(1, OUT_P)

    return {"w1big": w1big, "b1big": b1big, "w2big": w2big, "b2big": b2big,
            "w3": w3, "b3": b3, "w4": w4, "b4": b4}


# ----------------------------------------------------------------------------
# Deterministic synthetic parameters (eval-mode BN folded to scale/bias).
# ----------------------------------------------------------------------------
def init_params(key):
    ks = jax.random.split(key, 20)
    p = {}
    # conv1 (PyTorch weight (64,1,5,5) stored (5,5,64)) + BatchNorm2d(64)
    w1 = 0.1 * jax.random.normal(ks[0], (5, 5, C1), jnp.float32)
    cb1 = 0.1 * jax.random.normal(ks[1], (C1,), jnp.float32)
    g1 = 1.0 + 0.1 * jax.random.normal(ks[2], (C1,), jnp.float32)
    be1 = 0.1 * jax.random.normal(ks[3], (C1,), jnp.float32)
    m1 = 0.1 * jax.random.normal(ks[4], (C1,), jnp.float32)
    v1 = jax.random.uniform(ks[5], (C1,), jnp.float32, 0.5, 1.5)
    s1 = g1 / jnp.sqrt(v1 + BN_EPS)
    p["w1"], p["s1"], p["b1"] = w1, s1, be1 + s1 * (cb1 - m1)
    # conv2 (PyTorch weight (32,64,3,3) stored (3,3,64,32)) + BatchNorm2d(32)
    w2 = 0.05 * jax.random.normal(ks[6], (3, 3, C1, C2), jnp.float32)
    cb2 = 0.1 * jax.random.normal(ks[7], (C2,), jnp.float32)
    g2 = 1.0 + 0.1 * jax.random.normal(ks[8], (C2,), jnp.float32)
    be2 = 0.1 * jax.random.normal(ks[9], (C2,), jnp.float32)
    m2 = 0.1 * jax.random.normal(ks[10], (C2,), jnp.float32)
    v2 = jax.random.uniform(ks[11], (C2,), jnp.float32, 0.5, 1.5)
    s2 = g2 / jnp.sqrt(v2 + BN_EPS)
    p["w2"], p["s2"], p["b2"] = w2, s2, be2 + s2 * (cb2 - m2)
    # fc1 Linear(64,16) stored (in,out) + BatchNorm1d(16)
    p["fc1_w"] = 0.1 * jax.random.normal(ks[12], (FC1_IN, FC1_OUT), jnp.float32)
    p["fc1_b"] = 0.1 * jax.random.normal(ks[13], (FC1_OUT,), jnp.float32)
    g3 = 1.0 + 0.1 * jax.random.normal(ks[14], (FC1_OUT,), jnp.float32)
    be3 = 0.1 * jax.random.normal(ks[15], (FC1_OUT,), jnp.float32)
    m3 = 0.1 * jax.random.normal(ks[16], (FC1_OUT,), jnp.float32)
    v3 = jax.random.uniform(ks[17], (FC1_OUT,), jnp.float32, 0.5, 1.5)
    s3 = g3 / jnp.sqrt(v3 + BN_EPS)
    p["bn1_s"], p["bn1_b"] = s3, be3 - m3 * s3
    # fc2 Linear(16, num_label*10)
    p["fc2_w"] = 0.1 * jax.random.normal(ks[18], (FC1_OUT, FC2_OUT), jnp.float32)
    p["fc2_b"] = 0.1 * jax.random.normal(ks[19], (FC2_OUT,), jnp.float32)
    return p


# ----------------------------------------------------------------------------
# Pure-JAX reference (independent implementation for a correctness check)
# ----------------------------------------------------------------------------
@jax.jit
def reference_forward(x_nchw, p):
    x = jnp.transpose(x_nchw, (0, 2, 3, 1))                      # NHWC, cin = 1
    y = lax.conv_general_dilated(x, p["w1"][:, :, None, :], (1, 1), ((1, 1), (1, 1)),
                                 dimension_numbers=("NHWC", "HWIO", "NHWC"),
                                 precision=lax.Precision.HIGHEST)
    y = jnp.maximum(y * p["s1"] + p["b1"], 0.0)
    y = lax.reduce_window(y, -jnp.inf, lax.max, (1, 3, 3, 1), (1, 3, 3, 1), "VALID")
    y = lax.conv_general_dilated(y, p["w2"], (1, 1), ((1, 1), (1, 1)),
                                 dimension_numbers=("NHWC", "HWIO", "NHWC"),
                                 precision=lax.Precision.HIGHEST)
    y = jnp.maximum(y * p["s2"] + p["b2"], 0.0)
    y = lax.reduce_window(y, -jnp.inf, lax.max, (1, 2, 2, 1), (1, 2, 2, 1), "VALID")
    feat = jnp.transpose(y, (0, 3, 1, 2)).reshape(x.shape[0], -1)   # NCHW C-major flatten
    h = feat @ p["fc1_w"] + p["fc1_b"]
    h = jnp.maximum(h * p["bn1_s"] + p["bn1_b"], 0.0)
    out = h @ p["fc2_w"] + p["fc2_b"]
    return out[:, None, :]


if __name__ == "__main__":
    key = jax.random.PRNGKey(0)
    kx, kx2, kparam = jax.random.split(key, 3)
    params = init_params(kparam)
    kernel_params = build_kernel_params(params)

    # Small, module-consistent batch (NCHW like PyTorch).
    x = jax.random.normal(kx, (2, 1, H_IN, W_IN), jnp.float32)
    out = jax.block_until_ready(net_forward(x, kernel_params))
    assert out.shape == (2, 1, FC2_OUT), out.shape
    ref = jax.block_until_ready(reference_forward(x, params))
    # bf16 MXU operands vs f32 HIGHEST reference -> slightly relaxed tolerance.
    if not jnp.allclose(out, ref, rtol=5e-2, atol=5e-2):
        raise AssertionError(
            f"mismatch vs reference (batch=2): max abs err = "
            f"{float(jnp.max(jnp.abs(out - ref)))}")

    # Larger batch exercising the batch-tiled, multi-step ("parallel") grid path.
    xb = jax.random.normal(kx2, (2 * TB_MAX + 3, 1, H_IN, W_IN), jnp.float32)
    outb = jax.block_until_ready(net_forward(xb, kernel_params))
    refb = jax.block_until_ready(reference_forward(xb, params))
    if not jnp.allclose(outb, refb, rtol=5e-2, atol=5e-2):
        raise AssertionError(
            f"mismatch vs reference (batch={xb.shape[0]}): max abs err = "
            f"{float(jnp.max(jnp.abs(outb - refb)))}")

    print("KERNEL_OK")
</pallas_src>

<mosaic_0001>
module attributes {stable_mosaic.version = 11 : i64} {
  func.func @_net_kernel(%arg0: i32, %arg1: memref<8x128xbf16, #tpu.memory_space<vmem>>, %arg2: memref<128x4608xbf16, #tpu.memory_space<vmem>>, %arg3: memref<1x512xf32, #tpu.memory_space<vmem>>, %arg4: memref<512x512xbf16, #tpu.memory_space<vmem>>, %arg5: memref<1x128xf32, #tpu.memory_space<vmem>>, %arg6: memref<128x16xbf16, #tpu.memory_space<vmem>>, %arg7: memref<1x16xf32, #tpu.memory_space<vmem>>, %arg8: memref<16x128xbf16, #tpu.memory_space<vmem>>, %arg9: memref<1x128xf32, #tpu.memory_space<vmem>>, %arg10: memref<8x128xf32, #tpu.memory_space<vmem>>) attributes {dimension_semantics = [#tpu.dimension_semantics<parallel>], iteration_bounds = array<i64: 1>, scalar_prefetch = 0 : i64, scratch_operands = 0 : i64, tpu.core_type = #tpu.core_type<tc>, window_params = [{transform_indices = @transform_0, window_bounds = array<i64: 8, 128>}, {pipeline_mode = #tpu.pipeline_mode<synchronous>, transform_indices = @transform_1, window_bounds = array<i64: 128, 4608>}, {pipeline_mode = #tpu.pipeline_mode<synchronous>, transform_indices = @transform_2, window_bounds = array<i64: 1, 512>}, {pipeline_mode = #tpu.pipeline_mode<synchronous>, transform_indices = @transform_3, window_bounds = array<i64: 512, 512>}, {pipeline_mode = #tpu.pipeline_mode<synchronous>, transform_indices = @transform_4, window_bounds = array<i64: 1, 128>}, {pipeline_mode = #tpu.pipeline_mode<synchronous>, transform_indices = @transform_5, window_bounds = array<i64: 128, 16>}, {pipeline_mode = #tpu.pipeline_mode<synchronous>, transform_indices = @transform_6, window_bounds = array<i64: 1, 16>}, {pipeline_mode = #tpu.pipeline_mode<synchronous>, transform_indices = @transform_7, window_bounds = array<i64: 16, 128>}, {pipeline_mode = #tpu.pipeline_mode<synchronous>, transform_indices = @transform_8, window_bounds = array<i64: 1, 128>}, {transform_indices = @transform_9, window_bounds = array<i64: 8, 128>}]} {
    %c0 = arith.constant 0 : index
    %c0_0 = arith.constant 0 : index
    %0 = vector.load %arg1[%c0, %c0_0] : memref<8x128xbf16, #tpu.memory_space<vmem>>, vector<8x128xbf16>
    %c0_1 = arith.constant 0 : index
    %c0_2 = arith.constant 0 : index
    %1 = vector.load %arg2[%c0_1, %c0_2] : memref<128x4608xbf16, #tpu.memory_space<vmem>>, vector<128x4608xbf16>
    %cst = arith.constant dense<0.000000e+00> : vector<8x4608xf32>
    %2 = tpu.matmul %0, %1, %cst {dimension_numbers = #tpu.dot_dimension_numbers<[1], [0], [0], [1], [0, 0, 1, 1], [], []>} : vector<8x128xbf16>, vector<128x4608xbf16>, vector<8x4608xf32> -> vector<8x4608xf32>
    %3 = vector.extract_strided_slice %2 {offsets = [0, 0], sizes = [8, 512], strides = [1, 1]} : vector<8x4608xf32> to vector<8x512xf32>
    %4 = vector.extract_strided_slice %2 {offsets = [0, 512], sizes = [8, 512], strides = [1, 1]} : vector<8x4608xf32> to vector<8x512xf32>
    %5 = vector.extract_strided_slice %2 {offsets = [0, 1024], sizes = [8, 512], strides = [1, 1]} : vector<8x4608xf32> to vector<8x512xf32>
    %6 = vector.extract_strided_slice %2 {offsets = [0, 1536], sizes = [8, 512], strides = [1, 1]} : vector<8x4608xf32> to vector<8x512xf32>
    %7 = vector.extract_strided_slice %2 {offsets = [0, 2048], sizes = [8, 512], strides = [1, 1]} : vector<8x4608xf32> to vector<8x512xf32>
    %8 = vector.extract_strided_slice %2 {offsets = [0, 2560], sizes = [8, 512], strides = [1, 1]} : vector<8x4608xf32> to vector<8x512xf32>
    %9 = vector.extract_strided_slice %2 {offsets = [0, 3072], sizes = [8, 512], strides = [1, 1]} : vector<8x4608xf32> to vector<8x512xf32>
    %10 = vector.extract_strided_slice %2 {offsets = [0, 3584], sizes = [8, 512], strides = [1, 1]} : vector<8x4608xf32> to vector<8x512xf32>
    %11 = vector.extract_strided_slice %2 {offsets = [0, 4096], sizes = [8, 512], strides = [1, 1]} : vector<8x4608xf32> to vector<8x512xf32>
    %12 = arith.maximumf %3, %4 : vector<8x512xf32>
    %13 = arith.maximumf %5, %6 : vector<8x512xf32>
    %14 = arith.maximumf %7, %8 : vector<8x512xf32>
    %15 = arith.maximumf %9, %10 : vector<8x512xf32>
    %16 = arith.maximumf %12, %13 : vector<8x512xf32>
    %17 = arith.maximumf %14, %15 : vector<8x512xf32>
    %18 = arith.maximumf %16, %17 : vector<8x512xf32>
    %19 = arith.maximumf %18, %11 : vector<8x512xf32>
    %c0_3 = arith.constant 0 : index
    %c0_4 = arith.constant 0 : index
    %20 = vector.load %arg3[%c0_3, %c0_4] : memref<1x512xf32, #tpu.memory_space<vmem>>, vector<1x512xf32>
    %21 = vector.broadcast %20 : vector<1x512xf32> to vector<8x512xf32>
    %22 = arith.addf %19, %21 : vector<8x512xf32>
    %cst_5 = arith.constant 0.000000e+00 : f32
    %23 = vector.broadcast %cst_5 : f32 to vector<8x512xf32>
    %24 = arith.maximumf %22, %23 : vector<8x512xf32>
    %25 = arith.truncf %24 : vector<8x512xf32> to vector<8x512xbf16>
    %c0_6 = arith.constant 0 : index
    %c0_7 = arith.constant 0 : index
    %26 = vector.load %arg4[%c0_6, %c0_7] : memref<512x512xbf16, #tpu.memory_space<vmem>>, vector<512x512xbf16>
    %cst_8 = arith.constant dense<0.000000e+00> : vector<8x512xf32>
    %27 = tpu.matmul %25, %26, %cst_8 {dimension_numbers = #tpu.dot_dimension_numbers<[1], [0], [0], [1], [0, 0, 1, 1], [], []>} : vector<8x512xbf16>, vector<512x512xbf16>, vector<8x512xf32> -> vector<8x512xf32>
    %28 = vector.extract_strided_slice %27 {offsets = [0, 0], sizes = [8, 128], strides = [1, 1]} : vector<8x512xf32> to vector<8x128xf32>
    %29 = vector.extract_strided_slice %27 {offsets = [0, 128], sizes = [8, 128], strides = [1, 1]} : vector<8x512xf32> to vector<8x128xf32>
    %30 = vector.extract_strided_slice %27 {offsets = [0, 256], sizes = [8, 128], strides = [1, 1]} : vector<8x512xf32> to vector<8x128xf32>
    %31 = vector.extract_strided_slice %27 {offsets = [0, 384], sizes = [8, 128], strides = [1, 1]} : vector<8x512xf32> to vector<8x128xf32>
    %32 = arith.maximumf %28, %29 : vector<8x128xf32>
    %33 = arith.maximumf %30, %31 : vector<8x128xf32>
    %34 = arith.maximumf %32, %33 : vector<8x128xf32>
    %c0_9 = arith.constant 0 : index
    %c0_10 = arith.constant 0 : index
    %35 = vector.load %arg5[%c0_9, %c0_10] : memref<1x128xf32, #tpu.memory_space<vmem>>, vector<1x128xf32>
    %36 = vector.broadcast %35 : vector<1x128xf32> to vector<8x128xf32>
    %37 = arith.addf %34, %36 : vector<8x128xf32>
    %cst_11 = arith.constant 0.000000e+00 : f32
    %38 = vector.broadcast %cst_11 : f32 to vector<8x128xf32>
    %39 = arith.maximumf %37, %38 : vector<8x128xf32>
    %40 = arith.truncf %39 : vector<8x128xf32> to vector<8x128xbf16>
    %c0_12 = arith.constant 0 : index
    %c0_13 = arith.constant 0 : index
    %41 = vector.load %arg6[%c0_12, %c0_13] : memref<128x16xbf16, #tpu.memory_space<vmem>>, vector<128x16xbf16>
    %cst_14 = arith.constant dense<0.000000e+00> : vector<8x16xf32>
    %42 = tpu.matmul %40, %41, %cst_14 {dimension_numbers = #tpu.dot_dimension_numbers<[1], [0], [0], [1], [0, 0, 1, 1], [], []>} : vector<8x128xbf16>, vector<128x16xbf16>, vector<8x16xf32> -> vector<8x16xf32>
    %c0_15 = arith.constant 0 : index
    %c0_16 = arith.constant 0 : index
    %43 = vector.load %arg7[%c0_15, %c0_16] : memref<1x16xf32, #tpu.memory_space<vmem>>, vector<1x16xf32>
    %44 = vector.broadcast %43 : vector<1x16xf32> to vector<8x16xf32>
    %45 = arith.addf %42, %44 : vector<8x16xf32>
    %cst_17 = arith.constant 0.000000e+00 : f32
    %46 = vector.broadcast %cst_17 : f32 to vector<8x16xf32>
    %47 = arith.maximumf %45, %46 : vector<8x16xf32>
    %48 = arith.truncf %47 : vector<8x16xf32> to vector<8x16xbf16>
    %c0_18 = arith.constant 0 : index
    %c0_19 = arith.constant 0 : index
    %49 = vector.load %arg8[%c0_18, %c0_19] : memref<16x128xbf16, #tpu.memory_space<vmem>>, vector<16x128xbf16>
    %cst_20 = arith.constant dense<0.000000e+00> : vector<8x128xf32>
    %50 = tpu.matmul %48, %49, %cst_20 {dimension_numbers = #tpu.dot_dimension_numbers<[1], [0], [0], [1], [0, 0, 1, 1], [], []>} : vector<8x16xbf16>, vector<16x128xbf16>, vector<8x128xf32> -> vector<8x128xf32>
    %c0_21 = arith.constant 0 : index
    %c0_22 = arith.constant 0 : index
    %51 = vector.load %arg9[%c0_21, %c0_22] : memref<1x128xf32, #tpu.memory_space<vmem>>, vector<1x128xf32>
    %52 = vector.broadcast %51 : vector<1x128xf32> to vector<8x128xf32>
    %53 = arith.addf %50, %52 : vector<8x128xf32>
    %c0_23 = arith.constant 0 : index
    %c0_24 = arith.constant 0 : index
    %54 = vector.load %arg10[%c0_23, %c0_24] : memref<8x128xf32, #tpu.memory_space<vmem>>, vector<8x128xf32>
    tpu.vector_store %arg10[%c0_23, %c0_24], %53 {strides = array<i32>} : memref<8x128xf32, #tpu.memory_space<vmem>>, vector<8x128xf32>,
    return
  }
  func.func @transform_0(%arg0: i32) -> (i32, i32) {
    %c0_i32 = arith.constant 0 : i32
    %c0_i32_0 = arith.constant 0 : i32
    return %arg0, %c0_i32 : i32, i32
  }
  func.func @transform_1(%arg0: i32) -> (i32, i32) {
    %c0_i32 = arith.constant 0 : i32
    %c0_i32_0 = arith.constant 0 : i32
    %c0_i32_1 = arith.constant 0 : i32
    return %c0_i32, %c0_i32_0 : i32, i32
  }
  func.func @transform_2(%arg0: i32) -> (i32, i32) {
    %c0_i32 = arith.constant 0 : i32
    %c0_i32_0 = arith.constant 0 : i32
    %c0_i32_1 = arith.constant 0 : i32
    return %c0_i32, %c0_i32_0 : i32, i32
  }
  func.func @transform_3(%arg0: i32) -> (i32, i32) {
    %c0_i32 = arith.constant 0 : i32
    %c0_i32_0 = arith.constant 0 : i32
    %c0_i32_1 = arith.constant 0 : i32
    return %c0_i32, %c0_i32_0 : i32, i32
  }
  func.func @transform_4(%arg0: i32) -> (i32, i32) {
    %c0_i32 = arith.constant 0 : i32
    %c0_i32_0 = arith.constant 0 : i32
    %c0_i32_1 = arith.constant 0 : i32
    return %c0_i32, %c0_i32_0 : i32, i32
  }
  func.func @transform_5(%arg0: i32) -> (i32, i32) {
    %c0_i32 = arith.constant 0 : i32
    %c0_i32_0 = arith.constant 0 : i32
    %c0_i32_1 = arith.constant 0 : i32
    return %c0_i32, %c0_i32_0 : i32, i32
  }
  func.func @transform_6(%arg0: i32) -> (i32, i32) {
    %c0_i32 = arith.constant 0 : i32
    %c0_i32_0 = arith.constant 0 : i32
    %c0_i32_1 = arith.constant 0 : i32
    return %c0_i32, %c0_i32_0 : i32, i32
  }
  func.func @transform_7(%arg0: i32) -> (i32, i32) {
    %c0_i32 = arith.constant 0 : i32
    %c0_i32_0 = arith.constant 0 : i32
    %c0_i32_1 = arith.constant 0 : i32
    return %c0_i32, %c0_i32_0 : i32, i32
  }
  func.func @transform_8(%arg0: i32) -> (i32, i32) {
    %c0_i32 = arith.constant 0 : i32
    %c0_i32_0 = arith.constant 0 : i32
    %c0_i32_1 = arith.constant 0 : i32
    return %c0_i32, %c0_i32_0 : i32, i32
  }
  func.func @transform_9(%arg0: i32) -> (i32, i32) {
    %c0_i32 = arith.constant 0 : i32
    %c0_i32_0 = arith.constant 0 : i32
    return %arg0, %c0_i32 : i32, i32
  }
}

</mosaic_0001>

<llo_original>
// kernel: net_forward.1
$region0: #{net_forward.1}
  #allocation0 [shape = 'u32[]', space=smem, size = 0x4, offset = 0x4, fixed_abs, tag = 'smem constant byte address 0x4 - core index']
  #allocation1 [shape = 'u32[72,128]{1,0:T(1,128)}', space=vmem, size = 0x9000, scoped, tag = 'internal scratch']
  %s0 = inlined_call_operand.vmem [shape: bf16[8,128], index: 0, kind: input, shape index: {}]
  %s1 = inlined_call_operand.hbm [shape: bf16[128,4608], index: 1, kind: input, shape index: {}]
  %s2 = inlined_call_operand.hbm [shape: f32[1,512], index: 2, kind: input, shape index: {}]
  %s3 = inlined_call_operand.hbm [shape: bf16[512,512], index: 3, kind: input, shape index: {}]
  %s4 = inlined_call_operand.hbm [shape: f32[1,128], index: 4, kind: input, shape index: {}]
  %s5 = inlined_call_operand.vmem [shape: bf16[128,16], index: 5, kind: input, shape index: {}]
  %s6 = inlined_call_operand.hbm [shape: f32[1,16], index: 6, kind: input, shape index: {}]
  %s7 = inlined_call_operand.hbm [shape: bf16[16,128], index: 7, kind: input, shape index: {}]
  %s8 = inlined_call_operand.hbm [shape: f32[1,128], index: 8, kind: input, shape index: {}]
  %s9 = inlined_call_operand.vmem [shape: f32[8,128], index: 9, kind: output, shape index: {}]
  %s10 = sld [smem:[#allocation0]]
  $region74: #{net_forward.1} parent=0
    _
  %s12 = ssub.s32 1, %s10
  %s13 = scalar_select 0, %s12, %s10
  $region1: #{net_forward.1} parent=0
    #allocation2 [shape = 'u8[1179648]{0}', space=vmem, size = 0x120000, scoped, tag = 'input window, operand 1, single buffered']
    #allocation3 [shape = 's32[1]{0}', space=sflag, size = 0x4, scoped, tag = 'scoped memory for net_forward.1']
    #allocation4 [shape = 'u8[2048]{0}', space=vmem, size = 0x800, scoped, tag = 'input window, operand 2, single buffered']
    #allocation5 [shape = 's32[1]{0}', space=sflag, size = 0x4, scoped, tag = 'scoped memory for net_forward.1']
    #allocation6 [shape = 'u8[524288]{0}', space=vmem, size = 0x80000, scoped, tag = 'input window, operand 3, single buffered']
    #allocation7 [shape = 'u8[512]{0}', space=vmem, size = 0x400, scoped, tag = 'input window, operand 4, single buffered']
    #allocation8 [shape = 's32[1]{0}', space=sflag, size = 0x4, scoped, tag = 'scoped memory for net_forward.1']
    #allocation9 [shape = 'u8[512]{0}', space=vmem, size = 0x400, scoped, tag = 'input window, operand 6, single buffered']
    #allocation10 [shape = 'u8[4096]{0}', space=vmem, size = 0x1000, scoped, tag = 'input window, operand 7, single buffered']
    #allocation11 [shape = 's32[1]{0}', space=sflag, size = 0x4, scoped, tag = 'scoped memory for net_forward.1']
    #allocation12 [shape = 'u8[512]{0}', space=vmem, size = 0x400, scoped, tag = 'input window, operand 8, single buffered']
    %14 = vsyncpa [#allocation3], 0
    %15 = vsyncpa [#allocation5], 0
    %16 = vsyncpa [#allocation8], 0
    %17 = vsyncpa [#allocation11], 0
    // Predicated region
    $region2: #{net_forward.1} parent=1 // pred_check
      _
    $region3: #{net_forward.1} parent=1 // pred_check_branch
      %19 = sbr.rel (0) target = $region5
    $region4: #{net_forward.1} parent=1 // pred_region
      _
    $region5: #{net_forward.1} parent=1 // pred_fallthru
      _
    // Predicated region
    $region6: #{net_forward.1} parent=1 // pred_check
      _
    $region7: #{net_forward.1} parent=1 // pred_check_branch
      %21 = sbr.rel (0) target = $region9
    $region8: #{net_forward.1} parent=1 // pred_region
      %23 = vsyncadd [#allocation3], 0
      %s24 = sshll.u32 %s1, 4
      %s25 = int_to_ptr.hbm [resolvable:$true] %s24
      %s26 = sshll.u32 [#allocation2], 4
      %s27 = int_to_ptr.vmem [resolvable:$true] %s26
      %32 = dma.hbm_to_vmem [thread:$0]  %s25, 36864, %s27, [#allocation3], 2304, 2304, 144
    $region9: #{net_forward.1} parent=1 // pred_fallthru
      _
    // Predicated region
    $region10: #{net_forward.1} parent=1 // pred_check
      _
    $region11: #{net_forward.1} parent=1 // pred_check_branch
      %34 = sbr.rel (0) target = $region13
    $region12: #{net_forward.1} parent=1 // pred_region
      %36 = vsyncadd [#allocation5], 0
      %s38 = sshll.u32 %s2, 4
      %s39 = int_to_ptr.hbm [resolvable:$true] %s38
      %s40 = sshll.u32 [#allocation4], 4
      %s41 = int_to_ptr.vmem [resolvable:$true] %s40
      %43 = dma.hbm_to_vmem [thread:$0]  %s39, 64, %s41, [#allocation5]
    $region13: #{net_forward.1} parent=1 // pred_fallthru
      _
    // Predicated region
    $region14: #{net_forward.1} parent=1 // pred_check
      _
    $region15: #{net_forward.1} parent=1 // pred_check_branch
      %45 = sbr.rel (0) target = $region17
    $region16: #{net_forward.1} parent=1 // pred_region
      %47 = vsyncadd [#allocation5], 0
      %s48 = sshll.u32 %s3, 4
      %s49 = int_to_ptr.hbm [resolvable:$true] %s48
      %s50 = sshll.u32 [#allocation6], 4
      %s51 = int_to_ptr.vmem [resolvable:$true] %s50
      %56 = dma.hbm_to_vmem [thread:$0]  %s49, 16384, %s51, [#allocation5], 256, 256, 16
    $region17: #{net_forward.1} parent=1 // pred_fallthru
      _
    // Predicated region
    $region18: #{net_forward.1} parent=1 // pred_check
      _
    $region19: #{net_forward.1} parent=1 // pred_check_branch
      %58 = sbr.rel (0) target = $region21
    $region20: #{net_forward.1} parent=1 // pred_region
      %60 = vsyncadd [#allocation8], 0
      %s62 = sshll.u32 %s4, 4
      %s63 = int_to_ptr.hbm [resolvable:$true] %s62
      %s64 = sshll.u32 [#allocation7], 4
      %s65 = int_to_ptr.vmem [resolvable:$true] %s64
      %67 = dma.hbm_to_vmem [thread:$0]  %s63, 16, %s65, [#allocation8]
    $region21: #{net_forward.1} parent=1 // pred_fallthru
      _
    // Predicated region
    $region22: #{net_forward.1} parent=1 // pred_check
      _
    $region23: #{net_forward.1} parent=1 // pred_check_branch
      %69 = sbr.rel (0) target = $region25
    $region24: #{net_forward.1} parent=1 // pred_region
      _
    $region25: #{net_forward.1} parent=1 // pred_fallthru
      _
    // Predicated region
    $region26: #{net_forward.1} parent=1 // pred_check
      _
    $region27: #{net_forward.1} parent=1 // pred_check_branch
      %71 = sbr.rel (0) target = $region29
    $region28: #{net_forward.1} parent=1 // pred_region
      %73 = vsyncadd [#allocation8], 0
      %s75 = sshll.u32 %s6, 4
      %s76 = int_to_ptr.hbm [resolvable:$true] %s75
      %s77 = sshll.u32 [#allocation9], 4
      %s78 = int_to_ptr.vmem [resolvable:$true] %s77
      %80 = dma.hbm_to_vmem [thread:$0]  %s76, 16, %s78, [#allocation8]
    $region29: #{net_forward.1} parent=1 // pred_fallthru
      _
    // Predicated region
    $region30: #{net_forward.1} parent=1 // pred_check
      _
    $region31: #{net_forward.1} parent=1 // pred_check_branch
      %82 = sbr.rel (0) target = $region33
    $region32: #{net_forward.1} parent=1 // pred_region
      %84 = vsyncadd [#allocation11], 0
      %s85 = sshll.u32 %s7, 4
      %s86 = int_to_ptr.hbm [resolvable:$true] %s85
      %s87 = sshll.u32 [#allocation10], 4
      %s88 = int_to_ptr.vmem [resolvable:$true] %s87
      %93 = dma.hbm_to_vmem [thread:$0]  %s86, 128, %s88, [#allocation11], 64, 64, 4
    $region33: #{net_forward.1} parent=1 // pred_fallthru
      _
    // Predicated region
    $region34: #{net_forward.1} parent=1 // pred_check
      _
    $region35: #{net_forward.1} parent=1 // pred_check_branch
      %95 = sbr.rel (0) target = $region37
    $region36: #{net_forward.1} parent=1 // pred_region
      %97 = vsyncadd [#allocation11], 0
      %s99 = sshll.u32 %s8, 4
      %s100 = int_to_ptr.hbm [resolvable:$true] %s99
      %s101 = sshll.u32 [#allocation12], 4
      %s102 = int_to_ptr.vmem [resolvable:$true] %s101
      %104 = dma.hbm_to_vmem [thread:$0]  %s100, 16, %s102, [#allocation11]
    $region37: #{net_forward.1} parent=1 // pred_fallthru
      _
    // Predicated region
    $region38: #{net_forward.1} parent=1 // pred_check
      _
    $region39: #{net_forward.1} parent=1 // pred_check_branch
      %106 = sbr.rel (0) target = $region41
    $region40: #{net_forward.1} parent=1 // pred_region
      %108 = dma.done [#allocation3], 36864
    $region41: #{net_forward.1} parent=1 // pred_fallthru
      _
    // Predicated region
    $region42: #{net_forward.1} parent=1 // pred_check
      _
    $region43: #{net_forward.1} parent=1 // pred_check_branch
      %110 = sbr.rel (0) target = $region45
    $region44: #{net_forward.1} parent=1 // pred_region
      %112 = dma.done [#allocation5], 64
    $region45: #{net_forward.1} parent=1 // pred_fallthru
      _
    // Predicated region
    $region46: #{net_forward.1} parent=1 // pred_check
      _
    $region47: #{net_forward.1} parent=1 // pred_check_branch
      %114 = sbr.rel (0) target = $region49
    $region48: #{net_forward.1} parent=1 // pred_region
      %116 = dma.done [#allocation5], 16384
    $region49: #{net_forward.1} parent=1 // pred_fallthru
      _
    // Predicated region
    $region50: #{net_forward.1} parent=1 // pred_check
      _
    $region51: #{net_forward.1} parent=1 // pred_check_branch
      %118 = sbr.rel (0) target = $region53
    $region52: #{net_forward.1} parent=1 // pred_region
      %120 = dma.done [#allocation8], 16
    $region53: #{net_forward.1} parent=1 // pred_fallthru
      _
    // Predicated region
    $region54: #{net_forward.1} parent=1 // pred_check
      _
    $region55: #{net_forward.1} parent=1 // pred_check_branch
      %122 = sbr.rel (0) target = $region57
    $region56: #{net_forward.1} parent=1 // pred_region
      %124 = dma.done [#allocation8], 16
    $region57: #{net_forward.1} parent=1 // pred_fallthru
      _
    // Predicated region
    $region58: #{net_forward.1} parent=1 // pred_check
      _
    $region59: #{net_forward.1} parent=1 // pred_check_branch
      %126 = sbr.rel (0) target = $region61
    $region60: #{net_forward.1} parent=1 // pred_region
      %128 = dma.done [#allocation11], 128
    $region61: #{net_forward.1} parent=1 // pred_fallthru
      _
    // Predicated region
    $region62: #{net_forward.1} parent=1 // pred_check
      _
    $region63: #{net_forward.1} parent=1 // pred_check_branch
      %130 = sbr.rel (0) target = $region65
    $region64: #{net_forward.1} parent=1 // pred_region
      %132 = dma.done [#allocation11], 16
    $region65: #{net_forward.1} parent=1 // pred_fallthru
      _
    %v134 = vld [vmem:[%s0] sm:$0xf]
    %v135 = vld [vmem:[#allocation2] sm:$0xff]
    %v136 = vld [vmem:[#allocation2 + $0x8] sm:$0xff]
    %v137 = vld [vmem:[#allocation2 + $0x10] sm:$0xff]
    %v138 = vld [vmem:[#allocation2 + $0x18] sm:$0xff]
    %v139 = vld [vmem:[#allocation2 + $0x20] sm:$0xff]
    %v140 = vld [vmem:[#allocation2 + $0x28] sm:$0xff]
    %v141 = vld [vmem:[#allocation2 + $0x30] sm:$0xff]
    %v142 = vld [vmem:[#allocation2 + $0x38] sm:$0xff]
    %v143 = vld [vmem:[#allocation2 + $0x40] sm:$0xff]
    %v144 = vld [vmem:[#allocation2 + $0x48] sm:$0xff]
    %v145 = vld [vmem:[#allocation2 + $0x50] sm:$0xff]
    %v146 = vld [vmem:[#allocation2 + $0x58] sm:$0xff]
    %v147 = vld [vmem:[#allocation2 + $0x60] sm:$0xff]
    %v148 = vld [vmem:[#allocation2 + $0x68] sm:$0xff]
    %v149 = vld [vmem:[#allocation2 + $0x70] sm:$0xff]
    %v150 = vld [vmem:[#allocation2 + $0x78] sm:$0xff]
    %v151 = vld [vmem:[#allocation2 + $0x80] sm:$0xff]
    %v152 = vld [vmem:[#allocation2 + $0x88] sm:$0xff]
    %v153 = vld [vmem:[#allocation2 + $0x90] sm:$0xff]
    %v154 = vld [vmem:[#allocation2 + $0x98] sm:$0xff]
    %v155 = vld [vmem:[#allocation2 + $0xa0] sm:$0xff]
    %v156 = vld [vmem:[#allocation2 + $0xa8] sm:$0xff]
    %v157 = vld [vmem:[#allocation2 + $0xb0] sm:$0xff]
    %v158 = vld [vmem:[#allocation2 + $0xb8] sm:$0xff]
    %v159 = vld [vmem:[#allocation2 + $0xc0] sm:$0xff]
    %v160 = vld [vmem:[#allocation2 + $0xc8] sm:$0xff]
    %v161 = vld [vmem:[#allocation2 + $0xd0] sm:$0xff]
    %v162 = vld [vmem:[#allocation2 + $0xd8] sm:$0xff]
    %v163 = vld [vmem:[#allocation2 + $0xe0] sm:$0xff]
    %v164 = vld [vmem:[#allocation2 + $0xe8] sm:$0xff]
    %v165 = vld [vmem:[#allocation2 + $0xf0] sm:$0xff]
    %v166 = vld [vmem:[#allocation2 + $0xf8] sm:$0xff]
    %v167 = vld [vmem:[#allocation2 + $0x100] sm:$0xff]
    %v168 = vld [vmem:[#allocation2 + $0x108] sm:$0xff]
    %v169 = vld [vmem:[#allocation2 + $0x110] sm:$0xff]
    %v170 = vld [vmem:[#allocation2 + $0x118] sm:$0xff]
    %v171 = vld [vmem:[#allocation2 + $0x120] sm:$0xff]
    %v172 = vld [vmem:[#allocation2 + $0x128] sm:$0xff]
    %v173 = vld [vmem:[#allocation2 + $0x130] sm:$0xff]
    %v174 = vld [vmem:[#allocation2 + $0x138] sm:$0xff]
    %v175 = vld [vmem:[#allocation2 + $0x140] sm:$0xff]
    %v176 = vld [vmem:[#allocation2 + $0x148] sm:$0xff]
    %v177 = vld [vmem:[#allocation2 + $0x150] sm:$0xff]
    %v178 = vld [vmem:[#allocation2 + $0x158] sm:$0xff]
    %v179 = vld [vmem:[#allocation2 + $0x160] sm:$0xff]
    %v180 = vld [vmem:[#allocation2 + $0x168] sm:$0xff]
    %v181 = vld [vmem:[#allocation2 + $0x170] sm:$0xff]
    %v182 = vld [vmem:[#allocation2 + $0x178] sm:$0xff]
    %v183 = vld [vmem:[#allocation2 + $0x180] sm:$0xff]
    %v184 = vld [vmem:[#allocation2 + $0x188] sm:$0xff]
    %v185 = vld [vmem:[#allocation2 + $0x190] sm:$0xff]
    %v186 = vld [vmem:[#allocation2 + $0x198] sm:$0xff]
    %v187 = vld [vmem:[#allocation2 + $0x1a0] sm:$0xff]
    %v188 = vld [vmem:[#allocation2 + $0x1a8] sm:$0xff]
    %v189 = vld [vmem:[#allocation2 + $0x1b0] sm:$0xff]
    %v190 = vld [vmem:[#allocation2 + $0x1b8] sm:$0xff]
    %v191 = vld [vmem:[#allocation2 + $0x1c0] sm:$0xff]
    %v192 = vld [vmem:[#allocation2 + $0x1c8] sm:$0xff]
    %v193 = vld [vmem:[#allocation2 + $0x1d0] sm:$0xff]
    %v194 = vld [vmem:[#allocation2 + $0x1d8] sm:$0xff]
    %v195 = vld [vmem:[#allocation2 + $0x1e0] sm:$0xff]
    %v196 = vld [vmem:[#allocation2 + $0x1e8] sm:$0xff]
    %v197 = vld [vmem:[#allocation2 + $0x1f0] sm:$0xff]
    %v198 = vld [vmem:[#allocation2 + $0x1f8] sm:$0xff]
    %v199 = vld [vmem:[#allocation2 + $0x200] sm:$0xff]
    %v200 = vld [vmem:[#allocation2 + $0x208] sm:$0xff]
    %v201 = vld [vmem:[#allocation2 + $0x210] sm:$0xff]
    %v202 = vld [vmem:[#allocation2 + $0x218] sm:$0xff]
    %v203 = vld [vmem:[#allocation2 + $0x220] sm:$0xff]
    %v204 = vld [vmem:[#allocation2 + $0x228] sm:$0xff]
    %v205 = vld [vmem:[#allocation2 + $0x230] sm:$0xff]
    %v206 = vld [vmem:[#allocation2 + $0x238] sm:$0xff]
    %v207 = vld [vmem:[#allocation2 + $0x240] sm:$0xff]
    %v208 = vld [vmem:[#allocation2 + $0x248] sm:$0xff]
    %v209 = vld [vmem:[#allocation2 + $0x250] sm:$0xff]
    %v210 = vld [vmem:[#allocation2 + $0x258] sm:$0xff]
    %v211 = vld [vmem:[#allocation2 + $0x260] sm:$0xff]
    %v212 = vld [vmem:[#allocation2 + $0x268] sm:$0xff]
    %v213 = vld [vmem:[#allocation2 + $0x270] sm:$0xff]
    %v214 = vld [vmem:[#allocation2 + $0x278] sm:$0xff]
    %v215 = vld [vmem:[#allocation2 + $0x280] sm:$0xff]
    %v216 = vld [vmem:[#allocation2 + $0x288] sm:$0xff]
    %v217 = vld [vmem:[#allocation2 + $0x290] sm:$0xff]
    %v218 = vld [vmem:[#allocation2 + $0x298] sm:$0xff]
    %v219 = vld [vmem:[#allocation2 + $0x2a0] sm:$0xff]
    %v220 = vld [vmem:[#allocation2 + $0x2a8] sm:$0xff]
    %v221 = vld [vmem:[#allocation2 + $0x2b0] sm:$0xff]
    %v222 = vld [vmem:[#allocation2 + $0x2b8] sm:$0xff]
    %v223 = vld [vmem:[#allocation2 + $0x2c0] sm:$0xff]
    %v224 = vld [vmem:[#allocation2 + $0x2c8] sm:$0xff]
    %v225 = vld [vmem:[#allocation2 + $0x2d0] sm:$0xff]
    %v226 = vld [vmem:[#allocation2 + $0x2d8] sm:$0xff]
    %v227 = vld [vmem:[#allocation2 + $0x2e0] sm:$0xff]
    %v228 = vld [vmem:[#allocation2 + $0x2e8] sm:$0xff]
    %v229 = vld [vmem:[#allocation2 + $0x2f0] sm:$0xff]
    %v230 = vld [vmem:[#allocation2 + $0x2f8] sm:$0xff]
    %v231 = vld [vmem:[#allocation2 + $0x300] sm:$0xff]
    %v232 = vld [vmem:[#allocation2 + $0x308] sm:$0xff]
    %v233 = vld [vmem:[#allocation2 + $0x310] sm:$0xff]
    %v234 = vld [vmem:[#allocation2 + $0x318] sm:$0xff]
    %v235 = vld [vmem:[#allocation2 + $0x320] sm:$0xff]
    %v236 = vld [vmem:[#allocation2 + $0x328] sm:$0xff]
    %v237 = vld [vmem:[#allocation2 + $0x330] sm:$0xff]
    %v238 = vld [vmem:[#allocation2 + $0x338] sm:$0xff]
    %v239 = vld [vmem:[#allocation2 + $0x340] sm:$0xff]
    %v240 = vld [vmem:[#allocation2 + $0x348] sm:$0xff]
    %v241 = vld [vmem:[#allocation2 + $0x350] sm:$0xff]
    %v242 = vld [vmem:[#allocation2 + $0x358] sm:$0xff]
    %v243 = vld [vmem:[#allocation2 + $0x360] sm:$0xff]
    %v244 = vld [vmem:[#allocation2 + $0x368] sm:$0xff]
    %v245 = vld [vmem:[#allocation2 + $0x370] sm:$0xff]
    %v246 = vld [vmem:[#allocation2 + $0x378] sm:$0xff]
    %v247 = vld [vmem:[#allocation2 + $0x380] sm:$0xff]
    %v248 = vld [vmem:[#allocation2 + $0x388] sm:$0xff]
    %v249 = vld [vmem:[#allocation2 + $0x390] sm:$0xff]
    %v250 = vld [vmem:[#allocation2 + $0x398] sm:$0xff]
    %v251 = vld [vmem:[#allocation2 + $0x3a0] sm:$0xff]
    %v252 = vld [vmem:[#allocation2 + $0x3a8] sm:$0xff]
    %v253 = vld [vmem:[#allocation2 + $0x3b0] sm:$0xff]
    %v254 = vld [vmem:[#allocation2 + $0x3b8] sm:$0xff]
    %v255 = vld [vmem:[#allocation2 + $0x3c0] sm:$0xff]
    %v256 = vld [vmem:[#allocation2 + $0x3c8] sm:$0xff]
    %v257 = vld [vmem:[#allocation2 + $0x3d0] sm:$0xff]
    %v258 = vld [vmem:[#allocation2 + $0x3d8] sm:$0xff]
    %v259 = vld [vmem:[#allocation2 + $0x3e0] sm:$0xff]
    %v260 = vld [vmem:[#allocation2 + $0x3e8] sm:$0xff]
    %v261 = vld [vmem:[#allocation2 + $0x3f0] sm:$0xff]
    %v262 = vld [vmem:[#allocation2 + $0x3f8] sm:$0xff]
    %v263 = vld [vmem:[#allocation2 + $0x400] sm:$0xff]
    %v264 = vld [vmem:[#allocation2 + $0x408] sm:$0xff]
    %v265 = vld [vmem:[#allocation2 + $0x410] sm:$0xff]
    %v266 = vld [vmem:[#allocation2 + $0x418] sm:$0xff]
    %v267 = vld [vmem:[#allocation2 + $0x420] sm:$0xff]
    %v268 = vld [vmem:[#allocation2 + $0x428] sm:$0xff]
    %v269 = vld [vmem:[#allocation2 + $0x430] sm:$0xff]
    %v270 = vld [vmem:[#allocation2 + $0x438] sm:$0xff]
    %v271 = vld [vmem:[#allocation2 + $0x440] sm:$0xff]
    %v272 = vld [vmem:[#allocation2 + $0x448] sm:$0xff]
    %v273 = vld [vmem:[#allocation2 + $0x450] sm:$0xff]
    %v274 = vld [vmem:[#allocation2 + $0x458] sm:$0xff]
    %v275 = vld [vmem:[#allocation2 + $0x460] sm:$0xff]
    %v276 = vld [vmem:[#allocation2 + $0x468] sm:$0xff]
    %v277 = vld [vmem:[#allocation2 + $0x470] sm:$0xff]
    %v278 = vld [vmem:[#allocation2 + $0x478] sm:$0xff]
    %v279 = vld [vmem:[#allocation2 + $0x480] sm:$0xff]
    %v280 = vld [vmem:[#allocation2 + $0x488] sm:$0xff]
    %v281 = vld [vmem:[#allocation2 + $0x490] sm:$0xff]
    %v282 = vld [vmem:[#allocation2 + $0x498] sm:$0xff]
    %v283 = vld [vmem:[#allocation2 + $0x4a0] sm:$0xff]
    %v284 = vld [vmem:[#allocation2 + $0x4a8] sm:$0xff]
    %v285 = vld [vmem:[#allocation2 + $0x4b0] sm:$0xff]
    %v286 = vld [vmem:[#allocation2 + $0x4b8] sm:$0xff]
    %v287 = vld [vmem:[#allocation2 + $0x4c0] sm:$0xff]
    %v288 = vld [vmem:[#allocation2 + $0x4c8] sm:$0xff]
    %v289 = vld [vmem:[#allocation2 + $0x4d0] sm:$0xff]
    %v290 = vld [vmem:[#allocation2 + $0x4d8] sm:$0xff]
    %v291 = vld [vmem:[#allocation2 + $0x4e0] sm:$0xff]
    %v292 = vld [vmem:[#allocation2 + $0x4e8] sm:$0xff]
    %v293 = vld [vmem:[#allocation2 + $0x4f0] sm:$0xff]
    %v294 = vld [vmem:[#allocation2 + $0x4f8] sm:$0xff]
    %v295 = vld [vmem:[#allocation2 + $0x500] sm:$0xff]
    %v296 = vld [vmem:[#allocation2 + $0x508] sm:$0xff]
    %v297 = vld [vmem:[#allocation2 + $0x510] sm:$0xff]
    %v298 = vld [vmem:[#allocation2 + $0x518] sm:$0xff]
    %v299 = vld [vmem:[#allocation2 + $0x520] sm:$0xff]
    %v300 = vld [vmem:[#allocation2 + $0x528] sm:$0xff]
    %v301 = vld [vmem:[#allocation2 + $0x530] sm:$0xff]
    %v302 = vld [vmem:[#allocation2 + $0x538] sm:$0xff]
    %v303 = vld [vmem:[#allocation2 + $0x540] sm:$0xff]
    %v304 = vld [vmem:[#allocation2 + $0x548] sm:$0xff]
    %v305 = vld [vmem:[#allocation2 + $0x550] sm:$0xff]
    %v306 = vld [vmem:[#allocation2 + $0x558] sm:$0xff]
    %v307 = vld [vmem:[#allocation2 + $0x560] sm:$0xff]
    %v308 = vld [vmem:[#allocation2 + $0x568] sm:$0xff]
    %v309 = vld [vmem:[#allocation2 + $0x570] sm:$0xff]
    %v310 = vld [vmem:[#allocation2 + $0x578] sm:$0xff]
    %v311 = vld [vmem:[#allocation2 + $0x580] sm:$0xff]
    %v312 = vld [vmem:[#allocation2 + $0x588] sm:$0xff]
    %v313 = vld [vmem:[#allocation2 + $0x590] sm:$0xff]
    %v314 = vld [vmem:[#allocation2 + $0x598] sm:$0xff]
    %v315 = vld [vmem:[#allocation2 + $0x5a0] sm:$0xff]
    %v316 = vld [vmem:[#allocation2 + $0x5a8] sm:$0xff]
    %v317 = vld [vmem:[#allocation2 + $0x5b0] sm:$0xff]
    %v318 = vld [vmem:[#allocation2 + $0x5b8] sm:$0xff]
    %v319 = vld [vmem:[#allocation2 + $0x5c0] sm:$0xff]
    %v320 = vld [vmem:[#allocation2 + $0x5c8] sm:$0xff]
    %v321 = vld [vmem:[#allocation2 + $0x5d0] sm:$0xff]
    %v322 = vld [vmem:[#allocation2 + $0x5d8] sm:$0xff]
    %v323 = vld [vmem:[#allocation2 + $0x5e0] sm:$0xff]
    %v324 = vld [vmem:[#allocation2 + $0x5e8] sm:$0xff]
    %v325 = vld [vmem:[#allocation2 + $0x5f0] sm:$0xff]
    %v326 = vld [vmem:[#allocation2 + $0x5f8] sm:$0xff]
    %v327 = vld [vmem:[#allocation2 + $0x600] sm:$0xff]
    %v328 = vld [vmem:[#allocation2 + $0x608] sm:$0xff]
    %v329 = vld [vmem:[#allocation2 + $0x610] sm:$0xff]
    %v330 = vld [vmem:[#allocation2 + $0x618] sm:$0xff]
    %v331 = vld [vmem:[#allocation2 + $0x620] sm:$0xff]
    %v332 = vld [vmem:[#allocation2 + $0x628] sm:$0xff]
    %v333 = vld [vmem:[#allocation2 + $0x630] sm:$0xff]
    %v334 = vld [vmem:[#allocation2 + $0x638] sm:$0xff]
    %v335 = vld [vmem:[#allocation2 + $0x640] sm:$0xff]
    %v336 = vld [vmem:[#allocation2 + $0x648] sm:$0xff]
    %v337 = vld [vmem:[#allocation2 + $0x650] sm:$0xff]
    %v338 = vld [vmem:[#allocation2 + $0x658] sm:$0xff]
    %v339 = vld [vmem:[#allocation2 + $0x660] sm:$0xff]
    %v340 = vld [vmem:[#allocation2 + $0x668] sm:$0xff]
    %v341 = vld [vmem:[#allocation2 + $0x670] sm:$0xff]
    %v342 = vld [vmem:[#allocation2 + $0x678] sm:$0xff]
    %v343 = vld [vmem:[#allocation2 + $0x680] sm:$0xff]
    %v344 = vld [vmem:[#allocation2 + $0x688] sm:$0xff]
    %v345 = vld [vmem:[#allocation2 + $0x690] sm:$0xff]
    %v346 = vld [vmem:[#allocation2 + $0x698] sm:$0xff]
    %v347 = vld [vmem:[#allocation2 + $0x6a0] sm:$0xff]
    %v348 = vld [vmem:[#allocation2 + $0x6a8] sm:$0xff]
    %v349 = vld [vmem:[#allocation2 + $0x6b0] sm:$0xff]
    %v350 = vld [vmem:[#allocation2 + $0x6b8] sm:$0xff]
    %v351 = vld [vmem:[#allocation2 + $0x6c0] sm:$0xff]
    %v352 = vld [vmem:[#allocation2 + $0x6c8] sm:$0xff]
    %v353 = vld [vmem:[#allocation2 + $0x6d0] sm:$0xff]
    %v354 = vld [vmem:[#allocation2 + $0x6d8] sm:$0xff]
    %v355 = vld [vmem:[#allocation2 + $0x6e0] sm:$0xff]
    %v356 = vld [vmem:[#allocation2 + $0x6e8] sm:$0xff]
    %v357 = vld [vmem:[#allocation2 + $0x6f0] sm:$0xff]
    %v358 = vld [vmem:[#allocation2 + $0x6f8] sm:$0xff]
    %v359 = vld [vmem:[#allocation2 + $0x700] sm:$0xff]
    %v360 = vld [vmem:[#allocation2 + $0x708] sm:$0xff]
    %v361 = vld [vmem:[#allocation2 + $0x710] sm:$0xff]
    %v362 = vld [vmem:[#allocation2 + $0x718] sm:$0xff]
    %v363 = vld [vmem:[#allocation2 + $0x720] sm:$0xff]
    %v364 = vld [vmem:[#allocation2 + $0x728] sm:$0xff]
    %v365 = vld [vmem:[#allocation2 + $0x730] sm:$0xff]
    %v366 = vld [vmem:[#allocation2 + $0x738] sm:$0xff]
    %v367 = vld [vmem:[#allocation2 + $0x740] sm:$0xff]
    %v368 = vld [vmem:[#allocation2 + $0x748] sm:$0xff]
    %v369 = vld [vmem:[#allocation2 + $0x750] sm:$0xff]
    %v370 = vld [vmem:[#allocation2 + $0x758] sm:$0xff]
    %v371 = vld [vmem:[#allocation2 + $0x760] sm:$0xff]
    %v372 = vld [vmem:[#allocation2 + $0x768] sm:$0xff]
    %v373 = vld [vmem:[#allocation2 + $0x770] sm:$0xff]
    %v374 = vld [vmem:[#allocation2 + $0x778] sm:$0xff]
    %v375 = vld [vmem:[#allocation2 + $0x780] sm:$0xff]
    %v376 = vld [vmem:[#allocation2 + $0x788] sm:$0xff]
    %v377 = vld [vmem:[#allocation2 + $0x790] sm:$0xff]
    %v378 = vld [vmem:[#allocation2 + $0x798] sm:$0xff]
    %v379 = vld [vmem:[#allocation2 + $0x7a0] sm:$0xff]
    %v380 = vld [vmem:[#allocation2 + $0x7a8] sm:$0xff]
    %v381 = vld [vmem:[#allocation2 + $0x7b0] sm:$0xff]
    %v382 = vld [vmem:[#allocation2 + $0x7b8] sm:$0xff]
    %v383 = vld [vmem:[#allocation2 + $0x7c0] sm:$0xff]
    %v384 = vld [vmem:[#allocation2 + $0x7c8] sm:$0xff]
    %v385 = vld [vmem:[#allocation2 + $0x7d0] sm:$0xff]
    %v386 = vld [vmem:[#allocation2 + $0x7d8] sm:$0xff]
    %v387 = vld [vmem:[#allocation2 + $0x7e0] sm:$0xff]
    %v388 = vld [vmem:[#allocation2 + $0x7e8] sm:$0xff]
    %v389 = vld [vmem:[#allocation2 + $0x7f0] sm:$0xff]
    %v390 = vld [vmem:[#allocation2 + $0x7f8] sm:$0xff]
    %v391 = vld [vmem:[#allocation2 + $0x800] sm:$0xff]
    %v392 = vld [vmem:[#allocation2 + $0x808] sm:$0xff]
    %v393 = vld [vmem:[#allocation2 + $0x810] sm:$0xff]
    %v394 = vld [vmem:[#allocation2 + $0x818] sm:$0xff]
    %v395 = vld [vmem:[#allocation2 + $0x820] sm:$0xff]
    %v396 = vld [vmem:[#allocation2 + $0x828] sm:$0xff]
    %v397 = vld [vmem:[#allocation2 + $0x830] sm:$0xff]
    %v398 = vld [vmem:[#allocation2 + $0x838] sm:$0xff]
    %v399 = vld [vmem:[#allocation2 + $0x840] sm:$0xff]
    %v400 = vld [vmem:[#allocation2 + $0x848] sm:$0xff]
    %v401 = vld [vmem:[#allocation2 + $0x850] sm:$0xff]
    %v402 = vld [vmem:[#allocation2 + $0x858] sm:$0xff]
    %v403 = vld [vmem:[#allocation2 + $0x860] sm:$0xff]
    %v404 = vld [vmem:[#allocation2 + $0x868] sm:$0xff]
    %v405 = vld [vmem:[#allocation2 + $0x870] sm:$0xff]
    %v406 = vld [vmem:[#allocation2 + $0x878] sm:$0xff]
    %v407 = vld [vmem:[#allocation2 + $0x880] sm:$0xff]
    %v408 = vld [vmem:[#allocation2 + $0x888] sm:$0xff]
    %v409 = vld [vmem:[#allocation2 + $0x890] sm:$0xff]
    %v410 = vld [vmem:[#allocation2 + $0x898] sm:$0xff]
    %v411 = vld [vmem:[#allocation2 + $0x8a0] sm:$0xff]
    %v412 = vld [vmem:[#allocation2 + $0x8a8] sm:$0xff]
    %v413 = vld [vmem:[#allocation2 + $0x8b0] sm:$0xff]
    %v414 = vld [vmem:[#allocation2 + $0x8b8] sm:$0xff]
    %v415 = vld [vmem:[#allocation2 + $0x8c0] sm:$0xff]
    %v416 = vld [vmem:[#allocation2 + $0x8c8] sm:$0xff]
    %v417 = vld [vmem:[#allocation2 + $0x8d0] sm:$0xff]
    %v418 = vld [vmem:[#allocation2 + $0x8d8] sm:$0xff]
    %v419 = vld [vmem:[#allocation2 + $0x8e0] sm:$0xff]
    %v420 = vld [vmem:[#allocation2 + $0x8e8] sm:$0xff]
    %v421 = vld [vmem:[#allocation2 + $0x8f0] sm:$0xff]
    %v422 = vld [vmem:[#allocation2 + $0x8f8] sm:$0xff]
    %v711 = vunpack.c.l.b16 %v135
    %v712 = vunpack.c.h.b16 %v135
    %v713 = vunpack.c.l.b16 %v136
    %v714 = vunpack.c.h.b16 %v136
    %v715 = vunpack.c.l.b16 %v137
    %v716 = vunpack.c.h.b16 %v137
    %v717 = vunpack.c.l.b16 %v138
    %v718 = vunpack.c.h.b16 %v138
    %v719 = vunpack.c.l.b16 %v139
    %v720 = vunpack.c.h.b16 %v139
    %v721 = vunpack.c.l.b16 %v140
    %v722 = vunpack.c.h.b16 %v140
    %v723 = vunpack.c.l.b16 %v141
    %v724 = vunpack.c.h.b16 %v141
    %v725 = vunpack.c.l.b16 %v142
    %v726 = vunpack.c.h.b16 %v142
    %v727 = vunpack.c.l.b16 %v143
    %v728 = vunpack.c.h.b16 %v143
    %v729 = vunpack.c.l.b16 %v144
    %v730 = vunpack.c.h.b16 %v144
    %v731 = vunpack.c.l.b16 %v145
    %v732 = vunpack.c.h.b16 %v145
    %v733 = vunpack.c.l.b16 %v146
    %v734 = vunpack.c.h.b16 %v146
    %v735 = vunpack.c.l.b16 %v147
    %v736 = vunpack.c.h.b16 %v147
    %v737 = vunpack.c.l.b16 %v148
    %v738 = vunpack.c.h.b16 %v148
    %v739 = vunpack.c.l.b16 %v149
    %v740 = vunpack.c.h.b16 %v149
    %v741 = vunpack.c.l.b16 %v150
    %v742 = vunpack.c.h.b16 %v150
    %v743 = vunpack.c.l.b16 %v151
    %v744 = vunpack.c.h.b16 %v151
    %v745 = vunpack.c.l.b16 %v152
    %v746 = vunpack.c.h.b16 %v152
    %v747 = vunpack.c.l.b16 %v153
    %v748 = vunpack.c.h.b16 %v153
    %v749 = vunpack.c.l.b16 %v154
    %v750 = vunpack.c.h.b16 %v154
    %v751 = vunpack.c.l.b16 %v155
    %v752 = vunpack.c.h.b16 %v155
    %v753 = vunpack.c.l.b16 %v156
    %v754 = vunpack.c.h.b16 %v156
    %v755 = vunpack.c.l.b16 %v157
    %v756 = vunpack.c.h.b16 %v157
    %v757 = vunpack.c.l.b16 %v158
    %v758 = vunpack.c.h.b16 %v158
    %v759 = vunpack.c.l.b16 %v159
    %v760 = vunpack.c.h.b16 %v159
    %v761 = vunpack.c.l.b16 %v160
    %v762 = vunpack.c.h.b16 %v160
    %v763 = vunpack.c.l.b16 %v161
    %v764 = vunpack.c.h.b16 %v161
    %v765 = vunpack.c.l.b16 %v162
    %v766 = vunpack.c.h.b16 %v162
    %v767 = vunpack.c.l.b16 %v163
    %v768 = vunpack.c.h.b16 %v163
    %v769 = vunpack.c.l.b16 %v164
    %v770 = vunpack.c.h.b16 %v164
    %v771 = vunpack.c.l.b16 %v165
    %v772 = vunpack.c.h.b16 %v165
    %v773 = vunpack.c.l.b16 %v166
    %v774 = vunpack.c.h.b16 %v166
    %v775 = vunpack.c.l.b16 %v167
    %v776 = vunpack.c.h.b16 %v167
    %v777 = vunpack.c.l.b16 %v168
    %v778 = vunpack.c.h.b16 %v168
    %v779 = vunpack.c.l.b16 %v169
    %v780 = vunpack.c.h.b16 %v169
    %v781 = vunpack.c.l.b16 %v170
    %v782 = vunpack.c.h.b16 %v170
    %v783 = vunpack.c.l.b16 %v171
    %v784 = vunpack.c.h.b16 %v171
    %v785 = vunpack.c.l.b16 %v172
    %v786 = vunpack.c.h.b16 %v172
    %v787 = vunpack.c.l.b16 %v173
    %v788 = vunpack.c.h.b16 %v173
    %v789 = vunpack.c.l.b16 %v174
    %v790 = vunpack.c.h.b16 %v174
    %v791 = vunpack.c.l.b16 %v175
    %v792 = vunpack.c.h.b16 %v175
    %v793 = vunpack.c.l.b16 %v176
    %v794 = vunpack.c.h.b16 %v176
    %v795 = vunpack.c.l.b16 %v177
    %v796 = vunpack.c.h.b16 %v177
    %v797 = vunpack.c.l.b16 %v178
    %v798 = vunpack.c.h.b16 %v178
    %v799 = vunpack.c.l.b16 %v179
    %v800 = vunpack.c.h.b16 %v179
    %v801 = vunpack.c.l.b16 %v180
    %v802 = vunpack.c.h.b16 %v180
    %v803 = vunpack.c.l.b16 %v181
    %v804 = vunpack.c.h.b16 %v181
    %v805 = vunpack.c.l.b16 %v182
    %v806 = vunpack.c.h.b16 %v182
    %v807 = vunpack.c.l.b16 %v183
    %v808 = vunpack.c.h.b16 %v183
    %v809 = vunpack.c.l.b16 %v184
    %v810 = vunpack.c.h.b16 %v184
    %v811 = vunpack.c.l.b16 %v185
    %v812 = vunpack.c.h.b16 %v185
    %v813 = vunpack.c.l.b16 %v186
    %v814 = vunpack.c.h.b16 %v186
    %v815 = vunpack.c.l.b16 %v187
    %v816 = vunpack.c.h.b16 %v187
    %v817 = vunpack.c.l.b16 %v188
    %v818 = vunpack.c.h.b16 %v188
    %v819 = vunpack.c.l.b16 %v189
    %v820 = vunpack.c.h.b16 %v189
    %v821 = vunpack.c.l.b16 %v190
    %v822 = vunpack.c.h.b16 %v190
    %v823 = vunpack.c.l.b16 %v191
    %v824 = vunpack.c.h.b16 %v191
    %v825 = vunpack.c.l.b16 %v192
    %v826 = vunpack.c.h.b16 %v192
    %v827 = vunpack.c.l.b16 %v193
    %v828 = vunpack.c.h.b16 %v193
    %v829 = vunpack.c.l.b16 %v194
    %v830 = vunpack.c.h.b16 %v194
    %v831 = vunpack.c.l.b16 %v195
    %v832 = vunpack.c.h.b16 %v195
    %v833 = vunpack.c.l.b16 %v196
    %v834 = vunpack.c.h.b16 %v196
    %v835 = vunpack.c.l.b16 %v197
    %v836 = vunpack.c.h.b16 %v197
    %v837 = vunpack.c.l.b16 %v198
    %v838 = vunpack.c.h.b16 %v198
    %v839 = vunpack.c.l.b16 %v199
    %v840 = vunpack.c.h.b16 %v199
    %v841 = vunpack.c.l.b16 %v200
    %v842 = vunpack.c.h.b16 %v200
    %v843 = vunpack.c.l.b16 %v201
    %v844 = vunpack.c.h.b16 %v201
    %v845 = vunpack.c.l.b16 %v202
    %v846 = vunpack.c.h.b16 %v202
    %v847 = vunpack.c.l.b16 %v203
    %v848 = vunpack.c.h.b16 %v203
    %v849 = vunpack.c.l.b16 %v204
    %v850 = vunpack.c.h.b16 %v204
    %v851 = vunpack.c.l.b16 %v205
    %v852 = vunpack.c.h.b16 %v205
    %v853 = vunpack.c.l.b16 %v206
    %v854 = vunpack.c.h.b16 %v206
    %v855 = vunpack.c.l.b16 %v207
    %v856 = vunpack.c.h.b16 %v207
    %v857 = vunpack.c.l.b16 %v208
    %v858 = vunpack.c.h.b16 %v208
    %v859 = vunpack.c.l.b16 %v209
    %v860 = vunpack.c.h.b16 %v209
    %v861 = vunpack.c.l.b16 %v210
    %v862 = vunpack.c.h.b16 %v210
    %v863 = vunpack.c.l.b16 %v211
    %v864 = vunpack.c.h.b16 %v211
    %v865 = vunpack.c.l.b16 %v212
    %v866 = vunpack.c.h.b16 %v212
    %v867 = vunpack.c.l.b16 %v213
    %v868 = vunpack.c.h.b16 %v213
    %v869 = vunpack.c.l.b16 %v214
    %v870 = vunpack.c.h.b16 %v214
    %v871 = vunpack.c.l.b16 %v215
    %v872 = vunpack.c.h.b16 %v215
    %v873 = vunpack.c.l.b16 %v216
    %v874 = vunpack.c.h.b16 %v216
    %v875 = vunpack.c.l.b16 %v217
    %v876 = vunpack.c.h.b16 %v217
    %v877 = vunpack.c.l.b16 %v218
    %v878 = vunpack.c.h.b16 %v218
    %v879 = vunpack.c.l.b16 %v219
    %v880 = vunpack.c.h.b16 %v219
    %v881 = vunpack.c.l.b16 %v220
    %v882 = vunpack.c.h.b16 %v220
    %v883 = vunpack.c.l.b16 %v221
    %v884 = vunpack.c.h.b16 %v221
    %v885 = vunpack.c.l.b16 %v222
    %v886 = vunpack.c.h.b16 %v222
    %v887 = vunpack.c.l.b16 %v223
    %v888 = vunpack.c.h.b16 %v223
    %v889 = vunpack.c.l.b16 %v224
    %v890 = vunpack.c.h.b16 %v224
    %v891 = vunpack.c.l.b16 %v225
    %v892 = vunpack.c.h.b16 %v225
    %v893 = vunpack.c.l.b16 %v226
    %v894 = vunpack.c.h.b16 %v226
    %v895 = vunpack.c.l.b16 %v227
    %v896 = vunpack.c.h.b16 %v227
    %v897 = vunpack.c.l.b16 %v228
    %v898 = vunpack.c.h.b16 %v228
    %v899 = vunpack.c.l.b16 %v229
    %v900 = vunpack.c.h.b16 %v229
    %v901 = vunpack.c.l.b16 %v230
    %v902 = vunpack.c.h.b16 %v230
    %v903 = vunpack.c.l.b16 %v231
    %v904 = vunpack.c.h.b16 %v231
    %v905 = vunpack.c.l.b16 %v232
    %v906 = vunpack.c.h.b16 %v232
    %v907 = vunpack.c.l.b16 %v233
    %v908 = vunpack.c.h.b16 %v233
    %v909 = vunpack.c.l.b16 %v234
    %v910 = vunpack.c.h.b16 %v234
    %v911 = vunpack.c.l.b16 %v235
    %v912 = vunpack.c.h.b16 %v235
    %v913 = vunpack.c.l.b16 %v236
    %v914 = vunpack.c.h.b16 %v236
    %v915 = vunpack.c.l.b16 %v237
    %v916 = vunpack.c.h.b16 %v237
    %v917 = vunpack.c.l.b16 %v238
    %v918 = vunpack.c.h.b16 %v238
    %v919 = vunpack.c.l.b16 %v239
    %v920 = vunpack.c.h.b16 %v239
    %v921 = vunpack.c.l.b16 %v240
    %v922 = vunpack.c.h.b16 %v240
    %v923 = vunpack.c.l.b16 %v241
    %v924 = vunpack.c.h.b16 %v241
    %v925 = vunpack.c.l.b16 %v242
    %v926 = vunpack.c.h.b16 %v242
    %v927 = vunpack.c.l.b16 %v243
    %v928 = vunpack.c.h.b16 %v243
    %v929 = vunpack.c.l.b16 %v244
    %v930 = vunpack.c.h.b16 %v244
    %v931 = vunpack.c.l.b16 %v245
    %v932 = vunpack.c.h.b16 %v245
    %v933 = vunpack.c.l.b16 %v246
    %v934 = vunpack.c.h.b16 %v246
    %v935 = vunpack.c.l.b16 %v247
    %v936 = vunpack.c.h.b16 %v247
    %v937 = vunpack.c.l.b16 %v248
    %v938 = vunpack.c.h.b16 %v248
    %v939 = vunpack.c.l.b16 %v249
    %v940 = vunpack.c.h.b16 %v249
    %v941 = vunpack.c.l.b16 %v250
    %v942 = vunpack.c.h.b16 %v250
    %v943 = vunpack.c.l.b16 %v251
    %v944 = vunpack.c.h.b16 %v251
    %v945 = vunpack.c.l.b16 %v252
    %v946 = vunpack.c.h.b16 %v252
    %v947 = vunpack.c.l.b16 %v253
    %v948 = vunpack.c.h.b16 %v253
    %v949 = vunpack.c.l.b16 %v254
    %v950 = vunpack.c.h.b16 %v254
    %v951 = vunpack.c.l.b16 %v255
    %v952 = vunpack.c.h.b16 %v255
    %v953 = vunpack.c.l.b16 %v256
    %v954 = vunpack.c.h.b16 %v256
    %v955 = vunpack.c.l.b16 %v257
    %v956 = vunpack.c.h.b16 %v257
    %v957 = vunpack.c.l.b16 %v258
    %v958 = vunpack.c.h.b16 %v258
    %v959 = vunpack.c.l.b16 %v259
    %v960 = vunpack.c.h.b16 %v259
    %v961 = vunpack.c.l.b16 %v260
    %v962 = vunpack.c.h.b16 %v260
    %v963 = vunpack.c.l.b16 %v261
    %v964 = vunpack.c.h.b16 %v261
    %v965 = vunpack.c.l.b16 %v262
    %v966 = vunpack.c.h.b16 %v262
    %v967 = vunpack.c.l.b16 %v263
    %v968 = vunpack.c.h.b16 %v263
    %v969 = vunpack.c.l.b16 %v264
    %v970 = vunpack.c.h.b16 %v264
    %v971 = vunpack.c.l.b16 %v265
    %v972 = vunpack.c.h.b16 %v265
    %v973 = vunpack.c.l.b16 %v266
    %v974 = vunpack.c.h.b16 %v266
    %v975 = vunpack.c.l.b16 %v267
    %v976 = vunpack.c.h.b16 %v267
    %v977 = vunpack.c.l.b16 %v268
    %v978 = vunpack.c.h.b16 %v268
    %v979 = vunpack.c.l.b16 %v269
    %v980 = vunpack.c.h.b16 %v269
    %v981 = vunpack.c.l.b16 %v270
    %v982 = vunpack.c.h.b16 %v270
    %v983 = vunpack.c.l.b16 %v271
    %v984 = vunpack.c.h.b16 %v271
    %v985 = vunpack.c.l.b16 %v272
    %v986 = vunpack.c.h.b16 %v272
    %v987 = vunpack.c.l.b16 %v273
    %v988 = vunpack.c.h.b16 %v273
    %v989 = vunpack.c.l.b16 %v274
    %v990 = vunpack.c.h.b16 %v274
    %v991 = vunpack.c.l.b16 %v275
    %v992 = vunpack.c.h.b16 %v275
    %v993 = vunpack.c.l.b16 %v276
    %v994 = vunpack.c.h.b16 %v276
    %v995 = vunpack.c.l.b16 %v277
    %v996 = vunpack.c.h.b16 %v277
    %v997 = vunpack.c.l.b16 %v278
    %v998 = vunpack.c.h.b16 %v278
    %v999 = vunpack.c.l.b16 %v279
    %v1000 = vunpack.c.h.b16 %v279
    %v1001 = vunpack.c.l.b16 %v280
    %v1002 = vunpack.c.h.b16 %v280
    %v1003 = vunpack.c.l.b16 %v281
    %v1004 = vunpack.c.h.b16 %v281
    %v1005 = vunpack.c.l.b16 %v282
    %v1006 = vunpack.c.h.b16 %v282
    %v1007 = vunpack.c.l.b16 %v283
    %v1008 = vunpack.c.h.b16 %v283
    %v1009 = vunpack.c.l.b16 %v284
    %v1010 = vunpack.c.h.b16 %v284
    %v1011 = vunpack.c.l.b16 %v285
    %v1012 = vunpack.c.h.b16 %v285
    %v1013 = vunpack.c.l.b16 %v286
    %v1014 = vunpack.c.h.b16 %v286
    %v1015 = vunpack.c.l.b16 %v287
    %v1016 = vunpack.c.h.b16 %v287
    %v1017 = vunpack.c.l.b16 %v288
    %v1018 = vunpack.c.h.b16 %v288
    %v1019 = vunpack.c.l.b16 %v289
    %v1020 = vunpack.c.h.b16 %v289
    %v1021 = vunpack.c.l.b16 %v290
    %v1022 = vunpack.c.h.b16 %v290
    %v1023 = vunpack.c.l.b16 %v291
    %v1024 = vunpack.c.h.b16 %v291
    %v1025 = vunpack.c.l.b16 %v292
    %v1026 = vunpack.c.h.b16 %v292
    %v1027 = vunpack.c.l.b16 %v293
    %v1028 = vunpack.c.h.b16 %v293
    %v1029 = vunpack.c.l.b16 %v294
    %v1030 = vunpack.c.h.b16 %v294
    %v1031 = vunpack.c.l.b16 %v295
    %v1032 = vunpack.c.h.b16 %v295
    %v1033 = vunpack.c.l.b16 %v296
    %v1034 = vunpack.c.h.b16 %v296
    %v1035 = vunpack.c.l.b16 %v297
    %v1036 = vunpack.c.h.b16 %v297
    %v1037 = vunpack.c.l.b16 %v298
    %v1038 = vunpack.c.h.b16 %v298
    %v1039 = vunpack.c.l.b16 %v299
    %v1040 = vunpack.c.h.b16 %v299
    %v1041 = vunpack.c.l.b16 %v300
    %v1042 = vunpack.c.h.b16 %v300
    %v1043 = vunpack.c.l.b16 %v301
    %v1044 = vunpack.c.h.b16 %v301
    %v1045 = vunpack.c.l.b16 %v302
    %v1046 = vunpack.c.h.b16 %v302
    %v1047 = vunpack.c.l.b16 %v303
    %v1048 = vunpack.c.h.b16 %v303
    %v1049 = vunpack.c.l.b16 %v304
    %v1050 = vunpack.c.h.b16 %v304
    %v1051 = vunpack.c.l.b16 %v305
    %v1052 = vunpack.c.h.b16 %v305
    %v1053 = vunpack.c.l.b16 %v306
    %v1054 = vunpack.c.h.b16 %v306
    %v1055 = vunpack.c.l.b16 %v307
    %v1056 = vunpack.c.h.b16 %v307
    %v1057 = vunpack.c.l.b16 %v308
    %v1058 = vunpack.c.h.b16 %v308
    %v1059 = vunpack.c.l.b16 %v309
    %v1060 = vunpack.c.h.b16 %v309
    %v1061 = vunpack.c.l.b16 %v310
    %v1062 = vunpack.c.h.b16 %v310
    %v1063 = vunpack.c.l.b16 %v311
    %v1064 = vunpack.c.h.b16 %v311
    %v1065 = vunpack.c.l.b16 %v312
    %v1066 = vunpack.c.h.b16 %v312
    %v1067 = vunpack.c.l.b16 %v313
    %v1068 = vunpack.c.h.b16 %v313
    %v1069 = vunpack.c.l.b16 %v314
    %v1070 = vunpack.c.h.b16 %v314
    %v1071 = vunpack.c.l.b16 %v315
    %v1072 = vunpack.c.h.b16 %v315
    %v1073 = vunpack.c.l.b16 %v316
    %v1074 = vunpack.c.h.b16 %v316
    %v1075 = vunpack.c.l.b16 %v317
    %v1076 = vunpack.c.h.b16 %v317
    %v1077 = vunpack.c.l.b16 %v318
    %v1078 = vunpack.c.h.b16 %v318
    %v1079 = vunpack.c.l.b16 %v319
    %v1080 = vunpack.c.h.b16 %v319
    %v1081 = vunpack.c.l.b16 %v320
    %v1082 = vunpack.c.h.b16 %v320
    %v1083 = vunpack.c.l.b16 %v321
    %v1084 = vunpack.c.h.b16 %v321
    %v1085 = vunpack.c.l.b16 %v322
    %v1086 = vunpack.c.h.b16 %v322
    %v1087 = vunpack.c.l.b16 %v323
    %v1088 = vunpack.c.h.b16 %v323
    %v1089 = vunpack.c.l.b16 %v324
    %v1090 = vunpack.c.h.b16 %v324
    %v1091 = vunpack.c.l.b16 %v325
    %v1092 = vunpack.c.h.b16 %v325
    %v1093 = vunpack.c.l.b16 %v326
    %v1094 = vunpack.c.h.b16 %v326
    %v1095 = vunpack.c.l.b16 %v327
    %v1096 = vunpack.c.h.b16 %v327
    %v1097 = vunpack.c.l.b16 %v328
    %v1098 = vunpack.c.h.b16 %v328
    %v1099 = vunpack.c.l.b16 %v329
    %v1100 = vunpack.c.h.b16 %v329
    %v1101 = vunpack.c.l.b16 %v330
    %v1102 = vunpack.c.h.b16 %v330
    %v1103 = vunpack.c.l.b16 %v331
    %v1104 = vunpack.c.h.b16 %v331
    %v1105 = vunpack.c.l.b16 %v332
    %v1106 = vunpack.c.h.b16 %v332
    %v1107 = vunpack.c.l.b16 %v333
    %v1108 = vunpack.c.h.b16 %v333
    %v1109 = vunpack.c.l.b16 %v334
    %v1110 = vunpack.c.h.b16 %v334
    %v1111 = vunpack.c.l.b16 %v335
    %v1112 = vunpack.c.h.b16 %v335
    %v1113 = vunpack.c.l.b16 %v336
    %v1114 = vunpack.c.h.b16 %v336
    %v1115 = vunpack.c.l.b16 %v337
    %v1116 = vunpack.c.h.b16 %v337
    %v1117 = vunpack.c.l.b16 %v338
    %v1118 = vunpack.c.h.b16 %v338
    %v1119 = vunpack.c.l.b16 %v339
    %v1120 = vunpack.c.h.b16 %v339
    %v1121 = vunpack.c.l.b16 %v340
    %v1122 = vunpack.c.h.b16 %v340
    %v1123 = vunpack.c.l.b16 %v341
    %v1124 = vunpack.c.h.b16 %v341
    %v1125 = vunpack.c.l.b16 %v342
    %v1126 = vunpack.c.h.b16 %v342
    %v1127 = vunpack.c.l.b16 %v343
    %v1128 = vunpack.c.h.b16 %v343
    %v1129 = vunpack.c.l.b16 %v344
    %v1130 = vunpack.c.h.b16 %v344
    %v1131 = vunpack.c.l.b16 %v345
    %v1132 = vunpack.c.h.b16 %v345
    %v1133 = vunpack.c.l.b16 %v346
    %v1134 = vunpack.c.h.b16 %v346
    %v1135 = vunpack.c.l.b16 %v347
    %v1136 = vunpack.c.h.b16 %v347
    %v1137 = vunpack.c.l.b16 %v348
    %v1138 = vunpack.c.h.b16 %v348
    %v1139 = vunpack.c.l.b16 %v349
    %v1140 = vunpack.c.h.b16 %v349
    %v1141 = vunpack.c.l.b16 %v350
    %v1142 = vunpack.c.h.b16 %v350
    %v1143 = vunpack.c.l.b16 %v351
    %v1144 = vunpack.c.h.b16 %v351
    %v1145 = vunpack.c.l.b16 %v352
    %v1146 = vunpack.c.h.b16 %v352
    %v1147 = vunpack.c.l.b16 %v353
    %v1148 = vunpack.c.h.b16 %v353
    %v1149 = vunpack.c.l.b16 %v354
    %v1150 = vunpack.c.h.b16 %v354
    %v1151 = vunpack.c.l.b16 %v355
    %v1152 = vunpack.c.h.b16 %v355
    %v1153 = vunpack.c.l.b16 %v356
    %v1154 = vunpack.c.h.b16 %v356
    %v1155 = vunpack.c.l.b16 %v357
    %v1156 = vunpack.c.h.b16 %v357
    %v1157 = vunpack.c.l.b16 %v358
    %v1158 = vunpack.c.h.b16 %v358
    %v1159 = vunpack.c.l.b16 %v359
    %v1160 = vunpack.c.h.b16 %v359
    %v1161 = vunpack.c.l.b16 %v360
    %v1162 = vunpack.c.h.b16 %v360
    %v1163 = vunpack.c.l.b16 %v361
    %v1164 = vunpack.c.h.b16 %v361
    %v1165 = vunpack.c.l.b16 %v362
    %v1166 = vunpack.c.h.b16 %v362
    %v1167 = vunpack.c.l.b16 %v363
    %v1168 = vunpack.c.h.b16 %v363
    %v1169 = vunpack.c.l.b16 %v364
    %v1170 = vunpack.c.h.b16 %v364
    %v1171 = vunpack.c.l.b16 %v365
    %v1172 = vunpack.c.h.b16 %v365
    %v1173 = vunpack.c.l.b16 %v366
    %v1174 = vunpack.c.h.b16 %v366
    %v1175 = vunpack.c.l.b16 %v367
    %v1176 = vunpack.c.h.b16 %v367
    %v1177 = vunpack.c.l.b16 %v368
    %v1178 = vunpack.c.h.b16 %v368
    %v1179 = vunpack.c.l.b16 %v369
    %v1180 = vunpack.c.h.b16 %v369
    %v1181 = vunpack.c.l.b16 %v370
    %v1182 = vunpack.c.h.b16 %v370
    %v1183 = vunpack.c.l.b16 %v371
    %v1184 = vunpack.c.h.b16 %v371
    %v1185 = vunpack.c.l.b16 %v372
    %v1186 = vunpack.c.h.b16 %v372
    %v1187 = vunpack.c.l.b16 %v373
    %v1188 = vunpack.c.h.b16 %v373
    %v1189 = vunpack.c.l.b16 %v374
    %v1190 = vunpack.c.h.b16 %v374
    %v1191 = vunpack.c.l.b16 %v375
    %v1192 = vunpack.c.h.b16 %v375
    %v1193 = vunpack.c.l.b16 %v376
    %v1194 = vunpack.c.h.b16 %v376
    %v1195 = vunpack.c.l.b16 %v377
    %v1196 = vunpack.c.h.b16 %v377
    %v1197 = vunpack.c.l.b16 %v378
    %v1198 = vunpack.c.h.b16 %v378
    %v1199 = vunpack.c.l.b16 %v379
    %v1200 = vunpack.c.h.b16 %v379
    %v1201 = vunpack.c.l.b16 %v380
    %v1202 = vunpack.c.h.b16 %v380
    %v1203 = vunpack.c.l.b16 %v381
    %v1204 = vunpack.c.h.b16 %v381
    %v1205 = vunpack.c.l.b16 %v382
    %v1206 = vunpack.c.h.b16 %v382
    %v1207 = vunpack.c.l.b16 %v383
    %v1208 = vunpack.c.h.b16 %v383
    %v1209 = vunpack.c.l.b16 %v384
    %v1210 = vunpack.c.h.b16 %v384
    %v1211 = vunpack.c.l.b16 %v385
    %v1212 = vunpack.c.h.b16 %v385
    %v1213 = vunpack.c.l.b16 %v386
    %v1214 = vunpack.c.h.b16 %v386
    %v1215 = vunpack.c.l.b16 %v387
    %v1216 = vunpack.c.h.b16 %v387
    %v1217 = vunpack.c.l.b16 %v388
    %v1218 = vunpack.c.h.b16 %v388
    %v1219 = vunpack.c.l.b16 %v389
    %v1220 = vunpack.c.h.b16 %v389
    %v1221 = vunpack.c.l.b16 %v390
    %v1222 = vunpack.c.h.b16 %v390
    %v1223 = vunpack.c.l.b16 %v391
    %v1224 = vunpack.c.h.b16 %v391
    %v1225 = vunpack.c.l.b16 %v392
    %v1226 = vunpack.c.h.b16 %v392
    %v1227 = vunpack.c.l.b16 %v393
    %v1228 = vunpack.c.h.b16 %v393
    %v1229 = vunpack.c.l.b16 %v394
    %v1230 = vunpack.c.h.b16 %v394
    %v1231 = vunpack.c.l.b16 %v395
    %v1232 = vunpack.c.h.b16 %v395
    %v1233 = vunpack.c.l.b16 %v396
    %v1234 = vunpack.c.h.b16 %v396
    %v1235 = vunpack.c.l.b16 %v397
    %v1236 = vunpack.c.h.b16 %v397
    %v1237 = vunpack.c.l.b16 %v398
    %v1238 = vunpack.c.h.b16 %v398
    %v1239 = vunpack.c.l.b16 %v399
    %v1240 = vunpack.c.h.b16 %v399
    %v1241 = vunpack.c.l.b16 %v400
    %v1242 = vunpack.c.h.b16 %v400
    %v1243 = vunpack.c.l.b16 %v401
    %v1244 = vunpack.c.h.b16 %v401
    %v1245 = vunpack.c.l.b16 %v402
    %v1246 = vunpack.c.h.b16 %v402
    %v1247 = vunpack.c.l.b16 %v403
    %v1248 = vunpack.c.h.b16 %v403
    %v1249 = vunpack.c.l.b16 %v404
    %v1250 = vunpack.c.h.b16 %v404
    %v1251 = vunpack.c.l.b16 %v405
    %v1252 = vunpack.c.h.b16 %v405
    %v1253 = vunpack.c.l.b16 %v406
    %v1254 = vunpack.c.h.b16 %v406
    %v1255 = vunpack.c.l.b16 %v407
    %v1256 = vunpack.c.h.b16 %v407
    %v1257 = vunpack.c.l.b16 %v408
    %v1258 = vunpack.c.h.b16 %v408
    %v1259 = vunpack.c.l.b16 %v409
    %v1260 = vunpack.c.h.b16 %v409
    %v1261 = vunpack.c.l.b16 %v410
    %v1262 = vunpack.c.h.b16 %v410
    %v1263 = vunpack.c.l.b16 %v411
    %v1264 = vunpack.c.h.b16 %v411
    %v1265 = vunpack.c.l.b16 %v412
    %v1266 = vunpack.c.h.b16 %v412
    %v1267 = vunpack.c.l.b16 %v413
    %v1268 = vunpack.c.h.b16 %v413
    %v1269 = vunpack.c.l.b16 %v414
    %v1270 = vunpack.c.h.b16 %v414
    %v1271 = vunpack.c.l.b16 %v415
    %v1272 = vunpack.c.h.b16 %v415
    %v1273 = vunpack.c.l.b16 %v416
    %v1274 = vunpack.c.h.b16 %v416
    %v1275 = vunpack.c.l.b16 %v417
    %v1276 = vunpack.c.h.b16 %v417
    %v1277 = vunpack.c.l.b16 %v418
    %v1278 = vunpack.c.h.b16 %v418
    %v1279 = vunpack.c.l.b16 %v419
    %v1280 = vunpack.c.h.b16 %v419
    %v1281 = vunpack.c.l.b16 %v420
    %v1282 = vunpack.c.h.b16 %v420
    %v1283 = vunpack.c.l.b16 %v421
    %v1284 = vunpack.c.h.b16 %v421
    %v1285 = vunpack.c.l.b16 %v422
    %v1286 = vunpack.c.h.b16 %v422
    %v1287 = vpack.c.b16 %v747, %v711
    %v1288 = vpack.c.b16 %v748, %v712
    %v1289 = vpack.c.b16 %v749, %v713
    %v1290 = vpack.c.b16 %v750, %v714
    %v1291 = vpack.c.b16 %v751, %v715
    %v1292 = vpack.c.b16 %v752, %v716
    %v1293 = vpack.c.b16 %v753, %v717
    %v1294 = vpack.c.b16 %v754, %v718
    %v1295 = vpack.c.b16 %v755, %v719
    %v1296 = vpack.c.b16 %v756, %v720
    %v1297 = vpack.c.b16 %v757, %v721
    %v1298 = vpack.c.b16 %v758, %v722
    %v1299 = vpack.c.b16 %v759, %v723
    %v1300 = vpack.c.b16 %v760, %v724
    %v1301 = vpack.c.b16 %v761, %v725
    %v1302 = vpack.c.b16 %v762, %v726
    %v1303 = vpack.c.b16 %v763, %v727
    %v1304 = vpack.c.b16 %v764, %v728
    %v1305 = vpack.c.b16 %v765, %v729
    %v1306 = vpack.c.b16 %v766, %v730
    %v1307 = vpack.c.b16 %v767, %v731
    %v1308 = vpack.c.b16 %v768, %v732
    %v1309 = vpack.c.b16 %v769, %v733
    %v1310 = vpack.c.b16 %v770, %v734
    %v1311 = vpack.c.b16 %v771, %v735
    %v1312 = vpack.c.b16 %v772, %v736
    %v1313 = vpack.c.b16 %v773, %v737
    %v1314 = vpack.c.b16 %v774, %v738
    %v1315 = vpack.c.b16 %v775, %v739
    %v1316 = vpack.c.b16 %v776, %v740
    %v1317 = vpack.c.b16 %v777, %v741
    %v1318 = vpack.c.b16 %v778, %v742
    %v1319 = vpack.c.b16 %v779, %v743
    %v1320 = vpack.c.b16 %v780, %v744
    %v1321 = vpack.c.b16 %v781, %v745
    %v1322 = vpack.c.b16 %v782, %v746
    %v1323 = vpack.c.b16 %v819, %v783
    %v1324 = vpack.c.b16 %v820, %v784
    %v1325 = vpack.c.b16 %v821, %v785
    %v1326 = vpack.c.b16 %v822, %v786
    %v1327 = vpack.c.b16 %v823, %v787
    %v1328 = vpack.c.b16 %v824, %v788
    %v1329 = vpack.c.b16 %v825, %v789
    %v1330 = vpack.c.b16 %v826, %v790
    %v1331 = vpack.c.b16 %v827, %v791
    %v1332 = vpack.c.b16 %v828, %v792
    %v1333 = vpack.c.b16 %v829, %v793
    %v1334 = vpack.c.b16 %v830, %v794
    %v1335 = vpack.c.b16 %v831, %v795
    %v1336 = vpack.c.b16 %v832, %v796
    %v1337 = vpack.c.b16 %v833, %v797
    %v1338 = vpack.c.b16 %v834, %v798
    %v1339 = vpack.c.b16 %v835, %v799
    %v1340 = vpack.c.b16 %v836, %v800
    %v1341 = vpack.c.b16 %v837, %v801
    %v1342 = vpack.c.b16 %v838, %v802
    %v1343 = vpack.c.b16 %v839, %v803
    %v1344 = vpack.c.b16 %v840, %v804
    %v1345 = vpack.c.b16 %v841, %v805
    %v1346 = vpack.c.b16 %v842, %v806
    %v1347 = vpack.c.b16 %v843, %v807
    %v1348 = vpack.c.b16 %v844, %v808
    %v1349 = vpack.c.b16 %v845, %v809
    %v1350 = vpack.c.b16 %v846, %v810
    %v1351 = vpack.c.b16 %v847, %v811
    %v1352 = vpack.c.b16 %v848, %v812
    %v1353 = vpack.c.b16 %v849, %v813
    %v1354 = vpack.c.b16 %v850, %v814
    %v1355 = vpack.c.b16 %v851, %v815
    %v1356 = vpack.c.b16 %v852, %v816
    %v1357 = vpack.c.b16 %v853, %v817
    %v1358 = vpack.c.b16 %v854, %v818
    %v1359 = vpack.c.b16 %v891, %v855
    %v1360 = vpack.c.b16 %v892, %v856
    %v1361 = vpack.c.b16 %v893, %v857
    %v1362 = vpack.c.b16 %v894, %v858
    %v1363 = vpack.c.b16 %v895, %v859
    %v1364 = vpack.c.b16 %v896, %v860
    %v1365 = vpack.c.b16 %v897, %v861
    %v1366 = vpack.c.b16 %v898, %v862
    %v1367 = vpack.c.b16 %v899, %v863
    %v1368 = vpack.c.b16 %v900, %v864
    %v1369 = vpack.c.b16 %v901, %v865
    %v1370 = vpack.c.b16 %v902, %v866
    %v1371 = vpack.c.b16 %v903, %v867
    %v1372 = vpack.c.b16 %v904, %v868
    %v1373 = vpack.c.b16 %v905, %v869
    %v1374 = vpack.c.b16 %v906, %v870
    %v1375 = vpack.c.b16 %v907, %v871
    %v1376 = vpack.c.b16 %v908, %v872
    %v1377 = vpack.c.b16 %v909, %v873
    %v1378 = vpack.c.b16 %v910, %v874
    %v1379 = vpack.c.b16 %v911, %v875
    %v1380 = vpack.c.b16 %v912, %v876
    %v1381 = vpack.c.b16 %v913, %v877
    %v1382 = vpack.c.b16 %v914, %v878
    %v1383 = vpack.c.b16 %v915, %v879
    %v1384 = vpack.c.b16 %v916, %v880
    %v1385 = vpack.c.b16 %v917, %v881
    %v1386 = vpack.c.b16 %v918, %v882
    %v1387 = vpack.c.b16 %v919, %v883
    %v1388 = vpack.c.b16 %v920, %v884
    %v1389 = vpack.c.b16 %v921, %v885
    %v1390 = vpack.c.b16 %v922, %v886
    %v1391 = vpack.c.b16 %v923, %v887
    %v1392 = vpack.c.b16 %v924, %v888
    %v1393 = vpack.c.b16 %v925, %v889
    %v1394 = vpack.c.b16 %v926, %v890
    %v1395 = vpack.c.b16 %v963, %v927
    %v1396 = vpack.c.b16 %v964, %v928
    %v1397 = vpack.c.b16 %v965, %v929
    %v1398 = vpack.c.b16 %v966, %v930
    %v1399 = vpack.c.b16 %v967, %v931
    %v1400 = vpack.c.b16 %v968, %v932
    %v1401 = vpack.c.b16 %v969, %v933
    %v1402 = vpack.c.b16 %v970, %v934
    %v1403 = vpack.c.b16 %v971, %v935
    %v1404 = vpack.c.b16 %v972, %v936
    %v1405 = vpack.c.b16 %v973, %v937
    %v1406 = vpack.c.b16 %v974, %v938
    %v1407 = vpack.c.b16 %v975, %v939
    %v1408 = vpack.c.b16 %v976, %v940
    %v1409 = vpack.c.b16 %v977, %v941
    %v1410 = vpack.c.b16 %v978, %v942
    %v1411 = vpack.c.b16 %v979, %v943
    %v1412 = vpack.c.b16 %v980, %v944
    %v1413 = vpack.c.b16 %v981, %v945
    %v1414 = vpack.c.b16 %v982, %v946
    %v1415 = vpack.c.b16 %v983, %v947
    %v1416 = vpack.c.b16 %v984, %v948
    %v1417 = vpack.c.b16 %v985, %v949
    %v1418 = vpack.c.b16 %v986, %v950
    %v1419 = vpack.c.b16 %v987, %v951
    %v1420 = vpack.c.b16 %v988, %v952
    %v1421 = vpack.c.b16 %v989, %v953
    %v1422 = vpack.c.b16 %v990, %v954
    %v1423 = vpack.c.b16 %v991, %v955
    %v1424 = vpack.c.b16 %v992, %v956
    %v1425 = vpack.c.b16 %v993, %v957
    %v1426 = vpack.c.b16 %v994, %v958
    %v1427 = vpack.c.b16 %v995, %v959
    %v1428 = vpack.c.b16 %v996, %v960
    %v1429 = vpack.c.b16 %v997, %v961
    %v1430 = vpack.c.b16 %v998, %v962
    %v1431 = vpack.c.b16 %v1035, %v999
    %v1432 = vpack.c.b16 %v1036, %v1000
    %v1433 = vpack.c.b16 %v1037, %v1001
    %v1434 = vpack.c.b16 %v1038, %v1002
    %v1435 = vpack.c.b16 %v1039, %v1003
    %v1436 = vpack.c.b16 %v1040, %v1004
    %v1437 = vpack.c.b16 %v1041, %v1005
    %v1438 = vpack.c.b16 %v1042, %v1006
    %v1439 = vpack.c.b16 %v1043, %v1007
    %v1440 = vpack.c.b16 %v1044, %v1008
    %v1441 = vpack.c.b16 %v1045, %v1009
    %v1442 = vpack.c.b16 %v1046, %v1010
    %v1443 = vpack.c.b16 %v1047, %v1011
    %v1444 = vpack.c.b16 %v1048, %v1012
    %v1445 = vpack.c.b16 %v1049, %v1013
    %v1446 = vpack.c.b16 %v1050, %v1014
    %v1447 = vpack.c.b16 %v1051, %v1015
    %v1448 = vpack.c.b16 %v1052, %v1016
    %v1449 = vpack.c.b16 %v1053, %v1017
    %v1450 = vpack.c.b16 %v1054, %v1018
    %v1451 = vpack.c.b16 %v1055, %v1019
    %v1452 = vpack.c.b16 %v1056, %v1020
    %v1453 = vpack.c.b16 %v1057, %v1021
    %v1454 = vpack.c.b16 %v1058, %v1022
    %v1455 = vpack.c.b16 %v1059, %v1023
    %v1456 = vpack.c.b16 %v1060, %v1024
    %v1457 = vpack.c.b16 %v1061, %v1025
    %v1458 = vpack.c.b16 %v1062, %v1026
    %v1459 = vpack.c.b16 %v1063, %v1027
    %v1460 = vpack.c.b16 %v1064, %v1028
    %v1461 = vpack.c.b16 %v1065, %v1029
    %v1462 = vpack.c.b16 %v1066, %v1030
    %v1463 = vpack.c.b16 %v1067, %v1031
    %v1464 = vpack.c.b16 %v1068, %v1032
    %v1465 = vpack.c.b16 %v1069, %v1033
    %v1466 = vpack.c.b16 %v1070, %v1034
    %v1467 = vpack.c.b16 %v1107, %v1071
    %v1468 = vpack.c.b16 %v1108, %v1072
    %v1469 = vpack.c.b16 %v1109, %v1073
    %v1470 = vpack.c.b16 %v1110, %v1074
    %v1471 = vpack.c.b16 %v1111, %v1075
    %v1472 = vpack.c.b16 %v1112, %v1076
    %v1473 = vpack.c.b16 %v1113, %v1077
    %v1474 = vpack.c.b16 %v1114, %v1078
    %v1475 = vpack.c.b16 %v1115, %v1079
    %v1476 = vpack.c.b16 %v1116, %v1080
    %v1477 = vpack.c.b16 %v1117, %v1081
    %v1478 = vpack.c.b16 %v1118, %v1082
    %v1479 = vpack.c.b16 %v1119, %v1083
    %v1480 = vpack.c.b16 %v1120, %v1084
    %v1481 = vpack.c.b16 %v1121, %v1085
    %v1482 = vpack.c.b16 %v1122, %v1086
    %v1483 = vpack.c.b16 %v1123, %v1087
    %v1484 = vpack.c.b16 %v1124, %v1088
    %v1485 = vpack.c.b16 %v1125, %v1089
    %v1486 = vpack.c.b16 %v1126, %v1090
    %v1487 = vpack.c.b16 %v1127, %v1091
    %v1488 = vpack.c.b16 %v1128, %v1092
    %v1489 = vpack.c.b16 %v1129, %v1093
    %v1490 = vpack.c.b16 %v1130, %v1094
    %v1491 = vpack.c.b16 %v1131, %v1095
    %v1492 = vpack.c.b16 %v1132, %v1096
    %v1493 = vpack.c.b16 %v1133, %v1097
    %v1494 = vpack.c.b16 %v1134, %v1098
    %v1495 = vpack.c.b16 %v1135, %v1099
    %v1496 = vpack.c.b16 %v1136, %v1100
    %v1497 = vpack.c.b16 %v1137, %v1101
    %v1498 = vpack.c.b16 %v1138, %v1102
    %v1499 = vpack.c.b16 %v1139, %v1103
    %v1500 = vpack.c.b16 %v1140, %v1104
    %v1501 = vpack.c.b16 %v1141, %v1105
    %v1502 = vpack.c.b16 %v1142, %v1106
    %v1503 = vpack.c.b16 %v1179, %v1143
    %v1504 = vpack.c.b16 %v1180, %v1144
    %v1505 = vpack.c.b16 %v1181, %v1145
    %v1506 = vpack.c.b16 %v1182, %v1146
    %v1507 = vpack.c.b16 %v1183, %v1147
    %v1508 = vpack.c.b16 %v1184, %v1148
    %v1509 = vpack.c.b16 %v1185, %v1149
    %v1510 = vpack.c.b16 %v1186, %v1150
    %v1511 = vpack.c.b16 %v1187, %v1151
    %v1512 = vpack.c.b16 %v1188, %v1152
    %v1513 = vpack.c.b16 %v1189, %v1153
    %v1514 = vpack.c.b16 %v1190, %v1154
    %v1515 = vpack.c.b16 %v1191, %v1155
    %v1516 = vpack.c.b16 %v1192, %v1156
    %v1517 = vpack.c.b16 %v1193, %v1157
    %v1518 = vpack.c.b16 %v1194, %v1158
    %v1519 = vpack.c.b16 %v1195, %v1159
    %v1520 = vpack.c.b16 %v1196, %v1160
    %v1521 = vpack.c.b16 %v1197, %v1161
    %v1522 = vpack.c.b16 %v1198, %v1162
    %v1523 = vpack.c.b16 %v1199, %v1163
    %v1524 = vpack.c.b16 %v1200, %v1164
    %v1525 = vpack.c.b16 %v1201, %v1165
    %v1526 = vpack.c.b16 %v1202, %v1166
    %v1527 = vpack.c.b16 %v1203, %v1167
    %v1528 = vpack.c.b16 %v1204, %v1168
    %v1529 = vpack.c.b16 %v1205, %v1169
    %v1530 = vpack.c.b16 %v1206, %v1170
    %v1531 = vpack.c.b16 %v1207, %v1171
    %v1532 = vpack.c.b16 %v1208, %v1172
    %v1533 = vpack.c.b16 %v1209, %v1173
    %v1534 = vpack.c.b16 %v1210, %v1174
    %v1535 = vpack.c.b16 %v1211, %v1175
    %v1536 = vpack.c.b16 %v1212, %v1176
    %v1537 = vpack.c.b16 %v1213, %v1177
    %v1538 = vpack.c.b16 %v1214, %v1178
    %v1539 = vpack.c.b16 %v1251, %v1215
    %v1540 = vpack.c.b16 %v1252, %v1216
    %v1541 = vpack.c.b16 %v1253, %v1217
    %v1542 = vpack.c.b16 %v1254, %v1218
    %v1543 = vpack.c.b16 %v1255, %v1219
    %v1544 = vpack.c.b16 %v1256, %v1220
    %v1545 = vpack.c.b16 %v1257, %v1221
    %v1546 = vpack.c.b16 %v1258, %v1222
    %v1547 = vpack.c.b16 %v1259, %v1223
    %v1548 = vpack.c.b16 %v1260, %v1224
    %v1549 = vpack.c.b16 %v1261, %v1225
    %v1550 = vpack.c.b16 %v1262, %v1226
    %v1551 = vpack.c.b16 %v1263, %v1227
    %v1552 = vpack.c.b16 %v1264, %v1228
    %v1553 = vpack.c.b16 %v1265, %v1229
    %v1554 = vpack.c.b16 %v1266, %v1230
    %v1555 = vpack.c.b16 %v1267, %v1231
    %v1556 = vpack.c.b16 %v1268, %v1232
    %v1557 = vpack.c.b16 %v1269, %v1233
    %v1558 = vpack.c.b16 %v1270, %v1234
    %v1559 = vpack.c.b16 %v1271, %v1235
    %v1560 = vpack.c.b16 %v1272, %v1236
    %v1561 = vpack.c.b16 %v1273, %v1237
    %v1562 = vpack.c.b16 %v1274, %v1238
    %v1563 = vpack.c.b16 %v1275, %v1239
    %v1564 = vpack.c.b16 %v1276, %v1240
    %v1565 = vpack.c.b16 %v1277, %v1241
    %v1566 = vpack.c.b16 %v1278, %v1242
    %v1567 = vpack.c.b16 %v1279, %v1243
    %v1568 = vpack.c.b16 %v1280, %v1244
    %v1569 = vpack.c.b16 %v1281, %v1245
    %v1570 = vpack.c.b16 %v1282, %v1246
    %v1571 = vpack.c.b16 %v1283, %v1247
    %v1572 = vpack.c.b16 %v1284, %v1248
    %v1573 = vpack.c.b16 %v1285, %v1249
    %v1574 = vpack.c.b16 %v1286, %v1250
    %1863 = vmatpush.bf16.msra.mxu0 %v1539
    %1864 = vmatpush.bf16.msra.mxu0 %v1503
    %1865 = vmatpush.bf16.msra.mxu0 %v1467
    %1866 = vmatpush.bf16.msra.mxu0 %v1431
    %1867 = vmatpush.bf16.msra.mxu0 %v1395
    %1868 = vmatpush.bf16.msra.mxu0 %v1359
    %1869 = vmatpush.bf16.msra.mxu0 %v1323
    %1870 = vmatpush.bf16.msra.mxu0 %v1287
    %1871 = vmatmul.bf16.gmra.mxu0 %v134
    %v1872 = vpop.f32.mrf.mxu0
    %v1873 = vadd.f32 0.0, %v1872
    %v1874 = vpop.f32.mrf.mxu0
    %1875 = vdwg.mxu0
    %1876 = vmatpush.bf16.msra.mxu0 %v1540
    %1877 = vmatpush.bf16.msra.mxu0 %v1504
    %1878 = vmatpush.bf16.msra.mxu0 %v1468
    %1879 = vmatpush.bf16.msra.mxu0 %v1432
    %1880 = vmatpush.bf16.msra.mxu0 %v1396
    %1881 = vmatpush.bf16.msra.mxu0 %v1360
    %1882 = vmatpush.bf16.msra.mxu0 %v1324
    %1883 = vmatpush.bf16.msra.mxu0 %v1288
    %1884 = vmatmul.bf16.gmra.mxu0 %v134
    %v1885 = vpop.f32.mrf.mxu0
    %v1886 = vadd.f32 0.0, %v1885
    %v1887 = vpop.f32.mrf.mxu0
    %1888 = vdwg.mxu0
    %1889 = vmatpush.bf16.msra.mxu0 %v1541
    %1890 = vmatpush.bf16.msra.mxu0 %v1505
    %1891 = vmatpush.bf16.msra.mxu0 %v1469
    %1892 = vmatpush.bf16.msra.mxu0 %v1433
    %1893 = vmatpush.bf16.msra.mxu0 %v1397
    %1894 = vmatpush.bf16.msra.mxu0 %v1361
    %1895 = vmatpush.bf16.msra.mxu0 %v1325
    %1896 = vmatpush.bf16.msra.mxu0 %v1289
    %1897 = vmatmul.bf16.gmra.mxu0 %v134
    %v1898 = vpop.f32.mrf.mxu0
    %v1899 = vadd.f32 0.0, %v1898
    %v1900 = vpop.f32.mrf.mxu0
    %1901 = vdwg.mxu0
    %1902 = vmatpush.bf16.msra.mxu0 %v1542
    %1903 = vmatpush.bf16.msra.mxu0 %v1506
    %1904 = vmatpush.bf16.msra.mxu0 %v1470
    %1905 = vmatpush.bf16.msra.mxu0 %v1434
    %1906 = vmatpush.bf16.msra.mxu0 %v1398
    %1907 = vmatpush.bf16.msra.mxu0 %v1362
    %1908 = vmatpush.bf16.msra.mxu0 %v1326
    %1909 = vmatpush.bf16.msra.mxu0 %v1290
    %1910 = vmatmul.bf16.gmra.mxu0 %v134
    %v1911 = vpop.f32.mrf.mxu0
    %v1912 = vadd.f32 0.0, %v1911
    %v1913 = vpop.f32.mrf.mxu0
    %1914 = vdwg.mxu0
    %1915 = vmatpush.bf16.msra.mxu0 %v1543
    %1916 = vmatpush.bf16.msra.mxu0 %v1507
    %1917 = vmatpush.bf16.msra.mxu0 %v1471
    %1918 = vmatpush.bf16.msra.mxu0 %v1435
    %1919 = vmatpush.bf16.msra.mxu0 %v1399
    %1920 = vmatpush.bf16.msra.mxu0 %v1363
    %1921 = vmatpush.bf16.msra.mxu0 %v1327
    %1922 = vmatpush.bf16.msra.mxu0 %v1291
    %1923 = vmatmul.bf16.gmra.mxu0 %v134
    %v1924 = vpop.f32.mrf.mxu0
    %v1925 = vadd.f32 0.0, %v1924
    %v1926 = vpop.f32.mrf.mxu0
    %1927 = vdwg.mxu0
    %1928 = vmatpush.bf16.msra.mxu0 %v1544
    %1929 = vmatpush.bf16.msra.mxu0 %v1508
    %1930 = vmatpush.bf16.msra.mxu0 %v1472
    %1931 = vmatpush.bf16.msra.mxu0 %v1436
    %1932 = vmatpush.bf16.msra.mxu0 %v1400
    %1933 = vmatpush.bf16.msra.mxu0 %v1364
    %1934 = vmatpush.bf16.msra.mxu0 %v1328
    %1935 = vmatpush.bf16.msra.mxu0 %v1292
    %1936 = vmatmul.bf16.gmra.mxu0 %v134
    %v1937 = vpop.f32.mrf.mxu0
    %v1938 = vadd.f32 0.0, %v1937
    %v1939 = vpop.f32.mrf.mxu0
    %1940 = vdwg.mxu0
    %1941 = vmatpush.bf16.msra.mxu0 %v1545
    %1942 = vmatpush.bf16.msra.mxu0 %v1509
    %1943 = vmatpush.bf16.msra.mxu0 %v1473
    %1944 = vmatpush.bf16.msra.mxu0 %v1437
    %1945 = vmatpush.bf16.msra.mxu0 %v1401
    %1946 = vmatpush.bf16.msra.mxu0 %v1365
    %1947 = vmatpush.bf16.msra.mxu0 %v1329
    %1948 = vmatpush.bf16.msra.mxu0 %v1293
    %1949 = vmatmul.bf16.gmra.mxu0 %v134
    %v1950 = vpop.f32.mrf.mxu0
    %v1951 = vadd.f32 0.0, %v1950
    %v1952 = vpop.f32.mrf.mxu0
    %1953 = vdwg.mxu0
    %1954 = vmatpush.bf16.msra.mxu0 %v1546
    %1955 = vmatpush.bf16.msra.mxu0 %v1510
    %1956 = vmatpush.bf16.msra.mxu0 %v1474
    %1957 = vmatpush.bf16.msra.mxu0 %v1438
    %1958 = vmatpush.bf16.msra.mxu0 %v1402
    %1959 = vmatpush.bf16.msra.mxu0 %v1366
    %1960 = vmatpush.bf16.msra.mxu0 %v1330
    %1961 = vmatpush.bf16.msra.mxu0 %v1294
    %1962 = vmatmul.bf16.gmra.mxu0 %v134
    %v1963 = vpop.f32.mrf.mxu0
    %v1964 = vadd.f32 0.0, %v1963
    %v1965 = vpop.f32.mrf.mxu0
    %1966 = vdwg.mxu0
    %1967 = vmatpush.bf16.msra.mxu0 %v1547
    %1968 = vmatpush.bf16.msra.mxu0 %v1511
    %1969 = vmatpush.bf16.msra.mxu0 %v1475
    %1970 = vmatpush.bf16.msra.mxu0 %v1439
    %1971 = vmatpush.bf16.msra.mxu0 %v1403
    %1972 = vmatpush.bf16.msra.mxu0 %v1367
    %1973 = vmatpush.bf16.msra.mxu0 %v1331
    %1974 = vmatpush.bf16.msra.mxu0 %v1295
    %1975 = vmatmul.bf16.gmra.mxu0 %v134
    %v1976 = vpop.f32.mrf.mxu0
    %v1977 = vadd.f32 0.0, %v1976
    %v1978 = vpop.f32.mrf.mxu0
    %1979 = vdwg.mxu0
    %1980 = vmatpush.bf16.msra.mxu0 %v1548
    %1981 = vmatpush.bf16.msra.mxu0 %v1512
    %1982 = vmatpush.bf16.msra.mxu0 %v1476
    %1983 = vmatpush.bf16.msra.mxu0 %v1440
    %1984 = vmatpush.bf16.msra.mxu0 %v1404
    %1985 = vmatpush.bf16.msra.mxu0 %v1368
    %1986 = vmatpush.bf16.msra.mxu0 %v1332
    %1987 = vmatpush.bf16.msra.mxu0 %v1296
    %1988 = vmatmul.bf16.gmra.mxu0 %v134
    %v1989 = vpop.f32.mrf.mxu0
    %v1990 = vadd.f32 0.0, %v1989
    %v1991 = vpop.f32.mrf.mxu0
    %1992 = vdwg.mxu0
    %1993 = vmatpush.bf16.msra.mxu0 %v1549
    %1994 = vmatpush.bf16.msra.mxu0 %v1513
    %1995 = vmatpush.bf16.msra.mxu0 %v1477
    %1996 = vmatpush.bf16.msra.mxu0 %v1441
    %1997 = vmatpush.bf16.msra.mxu0 %v1405
    %1998 = vmatpush.bf16.msra.mxu0 %v1369
    %1999 = vmatpush.bf16.msra.mxu0 %v1333
    %2000 = vmatpush.bf16.msra.mxu0 %v1297
    %2001 = vmatmul.bf16.gmra.mxu0 %v134
    %v2002 = vpop.f32.mrf.mxu0
    %v2003 = vadd.f32 0.0, %v2002
    %v2004 = vpop.f32.mrf.mxu0
    %2005 = vdwg.mxu0
    %2006 = vmatpush.bf16.msra.mxu0 %v1550
    %2007 = vmatpush.bf16.msra.mxu0 %v1514
    %2008 = vmatpush.bf16.msra.mxu0 %v1478
    %2009 = vmatpush.bf16.msra.mxu0 %v1442
    %2010 = vmatpush.bf16.msra.mxu0 %v1406
    %2011 = vmatpush.bf16.msra.mxu0 %v1370
    %2012 = vmatpush.bf16.msra.mxu0 %v1334
    %2013 = vmatpush.bf16.msra.mxu0 %v1298
    %2014 = vmatmul.bf16.gmra.mxu0 %v134
    %v2015 = vpop.f32.mrf.mxu0
    %v2016 = vadd.f32 0.0, %v2015
    %v2017 = vpop.f32.mrf.mxu0
    %2018 = vdwg.mxu0
    %2019 = vmatpush.bf16.msra.mxu0 %v1551
    %2020 = vmatpush.bf16.msra.mxu0 %v1515
    %2021 = vmatpush.bf16.msra.mxu0 %v1479
    %2022 = vmatpush.bf16.msra.mxu0 %v1443
    %2023 = vmatpush.bf16.msra.mxu0 %v1407
    %2024 = vmatpush.bf16.msra.mxu0 %v1371
    %2025 = vmatpush.bf16.msra.mxu0 %v1335
    %2026 = vmatpush.bf16.msra.mxu0 %v1299
    %2027 = vmatmul.bf16.gmra.mxu0 %v134
    %v2028 = vpop.f32.mrf.mxu0
    %v2029 = vadd.f32 0.0, %v2028
    %v2030 = vpop.f32.mrf.mxu0
    %2031 = vdwg.mxu0
    %2032 = vmatpush.bf16.msra.mxu0 %v1552
    %2033 = vmatpush.bf16.msra.mxu0 %v1516
    %2034 = vmatpush.bf16.msra.mxu0 %v1480
    %2035 = vmatpush.bf16.msra.mxu0 %v1444
    %2036 = vmatpush.bf16.msra.mxu0 %v1408
    %2037 = vmatpush.bf16.msra.mxu0 %v1372
    %2038 = vmatpush.bf16.msra.mxu0 %v1336
    %2039 = vmatpush.bf16.msra.mxu0 %v1300
    %2040 = vmatmul.bf16.gmra.mxu0 %v134
    %v2041 = vpop.f32.mrf.mxu0
    %v2042 = vadd.f32 0.0, %v2041
    %v2043 = vpop.f32.mrf.mxu0
    %2044 = vdwg.mxu0
    %2045 = vmatpush.bf16.msra.mxu0 %v1553
    %2046 = vmatpush.bf16.msra.mxu0 %v1517
    %2047 = vmatpush.bf16.msra.mxu0 %v1481
    %2048 = vmatpush.bf16.msra.mxu0 %v1445
    %2049 = vmatpush.bf16.msra.mxu0 %v1409
    %2050 = vmatpush.bf16.msra.mxu0 %v1373
    %2051 = vmatpush.bf16.msra.mxu0 %v1337
    %2052 = vmatpush.bf16.msra.mxu0 %v1301
    %2053 = vmatmul.bf16.gmra.mxu0 %v134
    %v2054 = vpop.f32.mrf.mxu0
    %v2055 = vadd.f32 0.0, %v2054
    %v2056 = vpop.f32.mrf.mxu0
    %2057 = vdwg.mxu0
    %2058 = vmatpush.bf16.msra.mxu0 %v1554
    %2059 = vmatpush.bf16.msra.mxu0 %v1518
    %2060 = vmatpush.bf16.msra.mxu0 %v1482
    %2061 = vmatpush.bf16.msra.mxu0 %v1446
    %2062 = vmatpush.bf16.msra.mxu0 %v1410
    %2063 = vmatpush.bf16.msra.mxu0 %v1374
    %2064 = vmatpush.bf16.msra.mxu0 %v1338
    %2065 = vmatpush.bf16.msra.mxu0 %v1302
    %2066 = vmatmul.bf16.gmra.mxu0 %v134
    %v2067 = vpop.f32.mrf.mxu0
    %v2068 = vadd.f32 0.0, %v2067
    %v2069 = vpop.f32.mrf.mxu0
    %2070 = vdwg.mxu0
    %2071 = vmatpush.bf16.msra.mxu0 %v1555
    %2072 = vmatpush.bf16.msra.mxu0 %v1519
    %2073 = vmatpush.bf16.msra.mxu0 %v1483
    %2074 = vmatpush.bf16.msra.mxu0 %v1447
    %2075 = vmatpush.bf16.msra.mxu0 %v1411
    %2076 = vmatpush.bf16.msra.mxu0 %v1375
    %2077 = vmatpush.bf16.msra.mxu0 %v1339
    %2078 = vmatpush.bf16.msra.mxu0 %v1303
    %2079 = vmatmul.bf16.gmra.mxu0 %v134
    %v2080 = vpop.f32.mrf.mxu0
    %v2081 = vadd.f32 0.0, %v2080
    %v2082 = vpop.f32.mrf.mxu0
    %2083 = vdwg.mxu0
    %2084 = vmatpush.bf16.msra.mxu0 %v1556
    %2085 = vmatpush.bf16.msra.mxu0 %v1520
    %2086 = vmatpush.bf16.msra.mxu0 %v1484
    %2087 = vmatpush.bf16.msra.mxu0 %v1448
    %2088 = vmatpush.bf16.msra.mxu0 %v1412
    %2089 = vmatpush.bf16.msra.mxu0 %v1376
    %2090 = vmatpush.bf16.msra.mxu0 %v1340
    %2091 = vmatpush.bf16.msra.mxu0 %v1304
    %2092 = vmatmul.bf16.gmra.mxu0 %v134
    %v2093 = vpop.f32.mrf.mxu0
    %v2094 = vadd.f32 0.0, %v2093
    %v2095 = vpop.f32.mrf.mxu0
    %2096 = vdwg.mxu0
    %2097 = vmatpush.bf16.msra.mxu0 %v1557
    %2098 = vmatpush.bf16.msra.mxu0 %v1521
    %2099 = vmatpush.bf16.msra.mxu0 %v1485
    %2100 = vmatpush.bf16.msra.mxu0 %v1449
    %2101 = vmatpush.bf16.msra.mxu0 %v1413
    %2102 = vmatpush.bf16.msra.mxu0 %v1377
    %2103 = vmatpush.bf16.msra.mxu0 %v1341
    %2104 = vmatpush.bf16.msra.mxu0 %v1305
    %2105 = vmatmul.bf16.gmra.mxu0 %v134
    %v2106 = vpop.f32.mrf.mxu0
    %v2107 = vadd.f32 0.0, %v2106
    %v2108 = vpop.f32.mrf.mxu0
    %2109 = vdwg.mxu0
    %2110 = vmatpush.bf16.msra.mxu0 %v1558
    %2111 = vmatpush.bf16.msra.mxu0 %v1522
    %2112 = vmatpush.bf16.msra.mxu0 %v1486
    %2113 = vmatpush.bf16.msra.mxu0 %v1450
    %2114 = vmatpush.bf16.msra.mxu0 %v1414
    %2115 = vmatpush.bf16.msra.mxu0 %v1378
    %2116 = vmatpush.bf16.msra.mxu0 %v1342
    %2117 = vmatpush.bf16.msra.mxu0 %v1306
    %2118 = vmatmul.bf16.gmra.mxu0 %v134
    %v2119 = vpop.f32.mrf.mxu0
    %v2120 = vadd.f32 0.0, %v2119
    %v2121 = vpop.f32.mrf.mxu0
    %2122 = vdwg.mxu0
    %2123 = vmatpush.bf16.msra.mxu0 %v1559
    %2124 = vmatpush.bf16.msra.mxu0 %v1523
    %2125 = vmatpush.bf16.msra.mxu0 %v1487
    %2126 = vmatpush.bf16.msra.mxu0 %v1451
    %2127 = vmatpush.bf16.msra.mxu0 %v1415
    %2128 = vmatpush.bf16.msra.mxu0 %v1379
    %2129 = vmatpush.bf16.msra.mxu0 %v1343
    %2130 = vmatpush.bf16.msra.mxu0 %v1307
    %2131 = vmatmul.bf16.gmra.mxu0 %v134
    %v2132 = vpop.f32.mrf.mxu0
    %v2133 = vadd.f32 0.0, %v2132
    %v2134 = vpop.f32.mrf.mxu0
    %2135 = vdwg.mxu0
    %2136 = vmatpush.bf16.msra.mxu0 %v1560
    %2137 = vmatpush.bf16.msra.mxu0 %v1524
    %2138 = vmatpush.bf16.msra.mxu0 %v1488
    %2139 = vmatpush.bf16.msra.mxu0 %v1452
    %2140 = vmatpush.bf16.msra.mxu0 %v1416
    %2141 = vmatpush.bf16.msra.mxu0 %v1380
    %2142 = vmatpush.bf16.msra.mxu0 %v1344
    %2143 = vmatpush.bf16.msra.mxu0 %v1308
    %2144 = vmatmul.bf16.gmra.mxu0 %v134
    %v2145 = vpop.f32.mrf.mxu0
    %v2146 = vadd.f32 0.0, %v2145
    %v2147 = vpop.f32.mrf.mxu0
    %2148 = vdwg.mxu0
    %2149 = vmatpush.bf16.msra.mxu0 %v1561
    %2150 = vmatpush.bf16.msra.mxu0 %v1525
    %2151 = vmatpush.bf16.msra.mxu0 %v1489
    %2152 = vmatpush.bf16.msra.mxu0 %v1453
    %2153 = vmatpush.bf16.msra.mxu0 %v1417
    %2154 = vmatpush.bf16.msra.mxu0 %v1381
    %2155 = vmatpush.bf16.msra.mxu0 %v1345
    %2156 = vmatpush.bf16.msra.mxu0 %v1309
    %2157 = vmatmul.bf16.gmra.mxu0 %v134
    %v2158 = vpop.f32.mrf.mxu0
    %v2159 = vadd.f32 0.0, %v2158
    %v2160 = vpop.f32.mrf.mxu0
    %2161 = vdwg.mxu0
    %2162 = vmatpush.bf16.msra.mxu0 %v1562
    %2163 = vmatpush.bf16.msra.mxu0 %v1526
    %2164 = vmatpush.bf16.msra.mxu0 %v1490
    %2165 = vmatpush.bf16.msra.mxu0 %v1454
    %2166 = vmatpush.bf16.msra.mxu0 %v1418
    %2167 = vmatpush.bf16.msra.mxu0 %v1382
    %2168 = vmatpush.bf16.msra.mxu0 %v1346
    %2169 = vmatpush.bf16.msra.mxu0 %v1310
    %2170 = vmatmul.bf16.gmra.mxu0 %v134
    %v2171 = vpop.f32.mrf.mxu0
    %v2172 = vadd.f32 0.0, %v2171
    %v2173 = vpop.f32.mrf.mxu0
    %2174 = vdwg.mxu0
    %2175 = vmatpush.bf16.msra.mxu0 %v1563
    %2176 = vmatpush.bf16.msra.mxu0 %v1527
    %2177 = vmatpush.bf16.msra.mxu0 %v1491
    %2178 = vmatpush.bf16.msra.mxu0 %v1455
    %2179 = vmatpush.bf16.msra.mxu0 %v1419
    %2180 = vmatpush.bf16.msra.mxu0 %v1383
    %2181 = vmatpush.bf16.msra.mxu0 %v1347
    %2182 = vmatpush.bf16.msra.mxu0 %v1311
    %2183 = vmatmul.bf16.gmra.mxu0 %v134
    %v2184 = vpop.f32.mrf.mxu0
    %v2185 = vadd.f32 0.0, %v2184
    %v2186 = vpop.f32.mrf.mxu0
    %2187 = vdwg.mxu0
    %2188 = vmatpush.bf16.msra.mxu0 %v1564
    %2189 = vmatpush.bf16.msra.mxu0 %v1528
    %2190 = vmatpush.bf16.msra.mxu0 %v1492
    %2191 = vmatpush.bf16.msra.mxu0 %v1456
    %2192 = vmatpush.bf16.msra.mxu0 %v1420
    %2193 = vmatpush.bf16.msra.mxu0 %v1384
    %2194 = vmatpush.bf16.msra.mxu0 %v1348
    %2195 = vmatpush.bf16.msra.mxu0 %v1312
    %2196 = vmatmul.bf16.gmra.mxu0 %v134
    %v2197 = vpop.f32.mrf.mxu0
    %v2198 = vadd.f32 0.0, %v2197
    %v2199 = vpop.f32.mrf.mxu0
    %2200 = vdwg.mxu0
    %2201 = vmatpush.bf16.msra.mxu0 %v1565
    %2202 = vmatpush.bf16.msra.mxu0 %v1529
    %2203 = vmatpush.bf16.msra.mxu0 %v1493
    %2204 = vmatpush.bf16.msra.mxu0 %v1457
    %2205 = vmatpush.bf16.msra.mxu0 %v1421
    %2206 = vmatpush.bf16.msra.mxu0 %v1385
    %2207 = vmatpush.bf16.msra.mxu0 %v1349
    %2208 = vmatpush.bf16.msra.mxu0 %v1313
    %2209 = vmatmul.bf16.gmra.mxu0 %v134
    %v2210 = vpop.f32.mrf.mxu0
    %v2211 = vadd.f32 0.0, %v2210
    %v2212 = vpop.f32.mrf.mxu0
    %2213 = vdwg.mxu0
    %2214 = vmatpush.bf16.msra.mxu0 %v1566
    %2215 = vmatpush.bf16.msra.mxu0 %v1530
    %2216 = vmatpush.bf16.msra.mxu0 %v1494
    %2217 = vmatpush.bf16.msra.mxu0 %v1458
    %2218 = vmatpush.bf16.msra.mxu0 %v1422
    %2219 = vmatpush.bf16.msra.mxu0 %v1386
    %2220 = vmatpush.bf16.msra.mxu0 %v1350
    %2221 = vmatpush.bf16.msra.mxu0 %v1314
    %2222 = vmatmul.bf16.gmra.mxu0 %v134
    %v2223 = vpop.f32.mrf.mxu0
    %v2224 = vadd.f32 0.0, %v2223
    %v2225 = vpop.f32.mrf.mxu0
    %2226 = vdwg.mxu0
    %2227 = vmatpush.bf16.msra.mxu0 %v1567
    %2228 = vmatpush.bf16.msra.mxu0 %v1531
    %2229 = vmatpush.bf16.msra.mxu0 %v1495
    %2230 = vmatpush.bf16.msra.mxu0 %v1459
    %2231 = vmatpush.bf16.msra.mxu0 %v1423
    %2232 = vmatpush.bf16.msra.mxu0 %v1387
    %2233 = vmatpush.bf16.msra.mxu0 %v1351
    %2234 = vmatpush.bf16.msra.mxu0 %v1315
    %2235 = vmatmul.bf16.gmra.mxu0 %v134
    %v2236 = vpop.f32.mrf.mxu0
    %v2237 = vadd.f32 0.0, %v2236
    %v2238 = vpop.f32.mrf.mxu0
    %2239 = vdwg.mxu0
    %2240 = vmatpush.bf16.msra.mxu0 %v1568
    %2241 = vmatpush.bf16.msra.mxu0 %v1532
    %2242 = vmatpush.bf16.msra.mxu0 %v1496
    %2243 = vmatpush.bf16.msra.mxu0 %v1460
    %2244 = vmatpush.bf16.msra.mxu0 %v1424
    %2245 = vmatpush.bf16.msra.mxu0 %v1388
    %2246 = vmatpush.bf16.msra.mxu0 %v1352
    %2247 = vmatpush.bf16.msra.mxu0 %v1316
    %2248 = vmatmul.bf16.gmra.mxu0 %v134
    %v2249 = vpop.f32.mrf.mxu0
    %v2250 = vadd.f32 0.0, %v2249
    %v2251 = vpop.f32.mrf.mxu0
    %2252 = vdwg.mxu0
    %2253 = vmatpush.bf16.msra.mxu0 %v1569
    %2254 = vmatpush.bf16.msra.mxu0 %v1533
    %2255 = vmatpush.bf16.msra.mxu0 %v1497
    %2256 = vmatpush.bf16.msra.mxu0 %v1461
    %2257 = vmatpush.bf16.msra.mxu0 %v1425
    %2258 = vmatpush.bf16.msra.mxu0 %v1389
    %2259 = vmatpush.bf16.msra.mxu0 %v1353
    %2260 = vmatpush.bf16.msra.mxu0 %v1317
    %2261 = vmatmul.bf16.gmra.mxu0 %v134
    %v2262 = vpop.f32.mrf.mxu0
    %v2263 = vadd.f32 0.0, %v2262
    %v2264 = vpop.f32.mrf.mxu0
    %2265 = vdwg.mxu0
    %2266 = vmatpush.bf16.msra.mxu0 %v1570
    %2267 = vmatpush.bf16.msra.mxu0 %v1534
    %2268 = vmatpush.bf16.msra.mxu0 %v1498
    %2269 = vmatpush.bf16.msra.mxu0 %v1462
    %2270 = vmatpush.bf16.msra.mxu0 %v1426
    %2271 = vmatpush.bf16.msra.mxu0 %v1390
    %2272 = vmatpush.bf16.msra.mxu0 %v1354
    %2273 = vmatpush.bf16.msra.mxu0 %v1318
    %2274 = vmatmul.bf16.gmra.mxu0 %v134
    %v2275 = vpop.f32.mrf.mxu0
    %v2276 = vadd.f32 0.0, %v2275
    %v2277 = vpop.f32.mrf.mxu0
    %2278 = vdwg.mxu0
    %2279 = vmatpush.bf16.msra.mxu0 %v1571
    %2280 = vmatpush.bf16.msra.mxu0 %v1535
    %2281 = vmatpush.bf16.msra.mxu0 %v1499
    %2282 = vmatpush.bf16.msra.mxu0 %v1463
    %2283 = vmatpush.bf16.msra.mxu0 %v1427
    %2284 = vmatpush.bf16.msra.mxu0 %v1391
    %2285 = vmatpush.bf16.msra.mxu0 %v1355
    %2286 = vmatpush.bf16.msra.mxu0 %v1319
    %2287 = vmatmul.bf16.gmra.mxu0 %v134
    %v2288 = vpop.f32.mrf.mxu0
    %v2289 = vadd.f32 0.0, %v2288
    %v2290 = vpop.f32.mrf.mxu0
    %2291 = vdwg.mxu0
    %2292 = vmatpush.bf16.msra.mxu0 %v1572
    %2293 = vmatpush.bf16.msra.mxu0 %v1536
    %2294 = vmatpush.bf16.msra.mxu0 %v1500
    %2295 = vmatpush.bf16.msra.mxu0 %v1464
    %2296 = vmatpush.bf16.msra.mxu0 %v1428
    %2297 = vmatpush.bf16.msra.mxu0 %v1392
    %2298 = vmatpush.bf16.msra.mxu0 %v1356
    %2299 = vmatpush.bf16.msra.mxu0 %v1320
    %2300 = vmatmul.bf16.gmra.mxu0 %v134
    %v2301 = vpop.f32.mrf.mxu0
    %v2302 = vadd.f32 0.0, %v2301
    %v2303 = vpop.f32.mrf.mxu0
    %2304 = vdwg.mxu0
    %2305 = vmatpush.bf16.msra.mxu0 %v1573
    %2306 = vmatpush.bf16.msra.mxu0 %v1537
    %2307 = vmatpush.bf16.msra.mxu0 %v1501
    %2308 = vmatpush.bf16.msra.mxu0 %v1465
    %2309 = vmatpush.bf16.msra.mxu0 %v1429
    %2310 = vmatpush.bf16.msra.mxu0 %v1393
    %2311 = vmatpush.bf16.msra.mxu0 %v1357
    %2312 = vmatpush.bf16.msra.mxu0 %v1321
    %2313 = vmatmul.bf16.gmra.mxu0 %v134
    %v2314 = vpop.f32.mrf.mxu0
    %v2315 = vadd.f32 0.0, %v2314
    %v2316 = vpop.f32.mrf.mxu0
    %2317 = vdwg.mxu0
    %2318 = vmatpush.bf16.msra.mxu0 %v1574
    %2319 = vmatpush.bf16.msra.mxu0 %v1538
    %2320 = vmatpush.bf16.msra.mxu0 %v1502
    %2321 = vmatpush.bf16.msra.mxu0 %v1466
    %2322 = vmatpush.bf16.msra.mxu0 %v1430
    %2323 = vmatpush.bf16.msra.mxu0 %v1394
    %2324 = vmatpush.bf16.msra.mxu0 %v1358
    %2325 = vmatpush.bf16.msra.mxu0 %v1322
    %2326 = vmatmul.bf16.gmra.mxu0 %v134
    %v2327 = vpop.f32.mrf.mxu0
    %v2328 = vadd.f32 0.0, %v2327
    %v2329 = vpop.f32.mrf.mxu0
    %2330 = vdwg.mxu0
    %v2331 = vmax.f32 %v1873, %v1925
    %v2332 = vmax.f32 %v1886, %v1938
    %v2333 = vmax.f32 %v1899, %v1951
    %v2334 = vmax.f32 %v1912, %v1964
    %v2335 = vmax.f32 %v1977, %v2029
    %v2336 = vmax.f32 %v1990, %v2042
    %v2337 = vmax.f32 %v2003, %v2055
    %v2338 = vmax.f32 %v2016, %v2068
    %v2339 = vmax.f32 %v2081, %v2133
    %v2340 = vmax.f32 %v2094, %v2146
    %v2341 = vmax.f32 %v2107, %v2159
    %v2342 = vmax.f32 %v2120, %v2172
    %v2343 = vmax.f32 %v2185, %v2237
    %v2344 = vmax.f32 %v2198, %v2250
    %v2345 = vmax.f32 %v2211, %v2263
    %v2346 = vmax.f32 %v2224, %v2276
    %v2347 = vmax.f32 %v2331, %v2335
    %v2348 = vmax.f32 %v2332, %v2336
    %v2349 = vmax.f32 %v2333, %v2337
    %v2350 = vmax.f32 %v2334, %v2338
    %v2351 = vmax.f32 %v2339, %v2343
    %v2352 = vmax.f32 %v2340, %v2344
    %v2353 = vmax.f32 %v2341, %v2345
    %v2354 = vmax.f32 %v2342, %v2346
    %v2355 = vmax.f32 %v2347, %v2351
    %v2356 = vmax.f32 %v2348, %v2352
    %v2357 = vmax.f32 %v2349, %v2353
    %v2358 = vmax.f32 %v2350, %v2354
    %v2359 = vmax.f32 %v2355, %v2289
    %v2360 = vmax.f32 %v2356, %v2302
    %v2361 = vmax.f32 %v2357, %v2315
    %v2362 = vmax.f32 %v2358, %v2328
    %v2363 = vld [vmem:[#allocation4] sm:$0xf]
    %v2365 = vperm.slane %v2363, 0
    %v2366 = vperm.slane %v2363, 1
    %v2367 = vperm.slane %v2363, 2
    %v2368 = vperm.slane %v2363, 3
    %v2373 = vadd.f32 %v2359, %v2365
    %v2374 = vadd.f32 %v2360, %v2366
    %v2375 = vadd.f32 %v2361, %v2367
    %v2376 = vadd.f32 %v2362, %v2368
    %v2377 = vmax.f32 %v2373, 0.0
    %v2378 = vmax.f32 %v2374, 0.0
    %v2379 = vmax.f32 %v2375, 0.0
    %v2380 = vmax.f32 %v2376, 0.0
    %v2381 = vpack.c.bf16 %v2377, %v2377
    %v2382 = vpack.c.bf16 %v2378, %v2378
    %v2383 = vpack.c.bf16 %v2379, %v2379
    %v2384 = vpack.c.bf16 %v2380, %v2380
    %v2385 = vld [vmem:[#allocation6] sm:$0xff]
    %v2386 = vld [vmem:[#allocation6 + $0x8] sm:$0xff]
    %v2387 = vld [vmem:[#allocation6 + $0x10] sm:$0xff]
    %v2388 = vld [vmem:[#allocation6 + $0x18] sm:$0xff]
    %v2389 = vld [vmem:[#allocation6 + $0x20] sm:$0xff]
    %v2390 = vld [vmem:[#allocation6 + $0x28] sm:$0xff]
    %v2391 = vld [vmem:[#allocation6 + $0x30] sm:$0xff]
    %v2392 = vld [vmem:[#allocation6 + $0x38] sm:$0xff]
    %v2393 = vld [vmem:[#allocation6 + $0x40] sm:$0xff]
    %v2394 = vld [vmem:[#allocation6 + $0x48] sm:$0xff]
    %v2395 = vld [vmem:[#allocation6 + $0x50] sm:$0xff]
    %v2396 = vld [vmem:[#allocation6 + $0x58] sm:$0xff]
    %v2397 = vld [vmem:[#allocation6 + $0x60] sm:$0xff]
    %v2398 = vld [vmem:[#allocation6 + $0x68] sm:$0xff]
    %v2399 = vld [vmem:[#allocation6 + $0x70] sm:$0xff]
    %v2400 = vld [vmem:[#allocation6 + $0x78] sm:$0xff]
    %v2401 = vld [vmem:[#allocation6 + $0x80] sm:$0xff]
    %v2402 = vld [vmem:[#allocation6 + $0x88] sm:$0xff]
    %v2403 = vld [vmem:[#allocation6 + $0x90] sm:$0xff]
    %v2404 = vld [vmem:[#allocation6 + $0x98] sm:$0xff]
    %v2405 = vld [vmem:[#allocation6 + $0xa0] sm:$0xff]
    %v2406 = vld [vmem:[#allocation6 + $0xa8] sm:$0xff]
    %v2407 = vld [vmem:[#allocation6 + $0xb0] sm:$0xff]
    %v2408 = vld [vmem:[#allocation6 + $0xb8] sm:$0xff]
    %v2409 = vld [vmem:[#allocation6 + $0xc0] sm:$0xff]
    %v2410 = vld [vmem:[#allocation6 + $0xc8] sm:$0xff]
    %v2411 = vld [vmem:[#allocation6 + $0xd0] sm:$0xff]
    %v2412 = vld [vmem:[#allocation6 + $0xd8] sm:$0xff]
    %v2413 = vld [vmem:[#allocation6 + $0xe0] sm:$0xff]
    %v2414 = vld [vmem:[#allocation6 + $0xe8] sm:$0xff]
    %v2415 = vld [vmem:[#allocation6 + $0xf0] sm:$0xff]
    %v2416 = vld [vmem:[#allocation6 + $0xf8] sm:$0xff]
    %v2417 = vld [vmem:[#allocation6 + $0x100] sm:$0xff]
    %v2418 = vld [vmem:[#allocation6 + $0x108] sm:$0xff]
    %v2419 = vld [vmem:[#allocation6 + $0x110] sm:$0xff]
    %v2420 = vld [vmem:[#allocation6 + $0x118] sm:$0xff]
    %v2421 = vld [vmem:[#allocation6 + $0x120] sm:$0xff]
    %v2422 = vld [vmem:[#allocation6 + $0x128] sm:$0xff]
    %v2423 = vld [vmem:[#allocation6 + $0x130] sm:$0xff]
    %v2424 = vld [vmem:[#allocation6 + $0x138] sm:$0xff]
    %v2425 = vld [vmem:[#allocation6 + $0x140] sm:$0xff]
    %v2426 = vld [vmem:[#allocation6 + $0x148] sm:$0xff]
    %v2427 = vld [vmem:[#allocation6 + $0x150] sm:$0xff]
    %v2428 = vld [vmem:[#allocation6 + $0x158] sm:$0xff]
    %v2429 = vld [vmem:[#allocation6 + $0x160] sm:$0xff]
    %v2430 = vld [vmem:[#allocation6 + $0x168] sm:$0xff]
    %v2431 = vld [vmem:[#allocation6 + $0x170] sm:$0xff]
    %v2432 = vld [vmem:[#allocation6 + $0x178] sm:$0xff]
    %v2433 = vld [vmem:[#allocation6 + $0x180] sm:$0xff]
    %v2434 = vld [vmem:[#allocation6 + $0x188] sm:$0xff]
    %v2435 = vld [vmem:[#allocation6 + $0x190] sm:$0xff]
    %v2436 = vld [vmem:[#allocation6 + $0x198] sm:$0xff]
    %v2437 = vld [vmem:[#allocation6 + $0x1a0] sm:$0xff]
    %v2438 = vld [vmem:[#allocation6 + $0x1a8] sm:$0xff]
    %v2439 = vld [vmem:[#allocation6 + $0x1b0] sm:$0xff]
    %v2440 = vld [vmem:[#allocation6 + $0x1b8] sm:$0xff]
    %v2441 = vld [vmem:[#allocation6 + $0x1c0] sm:$0xff]
    %v2442 = vld [vmem:[#allocation6 + $0x1c8] sm:$0xff]
    %v2443 = vld [vmem:[#allocation6 + $0x1d0] sm:$0xff]
    %v2444 = vld [vmem:[#allocation6 + $0x1d8] sm:$0xff]
    %v2445 = vld [vmem:[#allocation6 + $0x1e0] sm:$0xff]
    %v2446 = vld [vmem:[#allocation6 + $0x1e8] sm:$0xff]
    %v2447 = vld [vmem:[#allocation6 + $0x1f0] sm:$0xff]
    %v2448 = vld [vmem:[#allocation6 + $0x1f8] sm:$0xff]
    %v2449 = vld [vmem:[#allocation6 + $0x200] sm:$0xff]
    %v2450 = vld [vmem:[#allocation6 + $0x208] sm:$0xff]
    %v2451 = vld [vmem:[#allocation6 + $0x210] sm:$0xff]
    %v2452 = vld [vmem:[#allocation6 + $0x218] sm:$0xff]
    %v2453 = vld [vmem:[#allocation6 + $0x220] sm:$0xff]
    %v2454 = vld [vmem:[#allocation6 + $0x228] sm:$0xff]
    %v2455 = vld [vmem:[#allocation6 + $0x230] sm:$0xff]
    %v2456 = vld [vmem:[#allocation6 + $0x238] sm:$0xff]
    %v2457 = vld [vmem:[#allocation6 + $0x240] sm:$0xff]
    %v2458 = vld [vmem:[#allocation6 + $0x248] sm:$0xff]
    %v2459 = vld [vmem:[#allocation6 + $0x250] sm:$0xff]
    %v2460 = vld [vmem:[#allocation6 + $0x258] sm:$0xff]
    %v2461 = vld [vmem:[#allocation6 + $0x260] sm:$0xff]
    %v2462 = vld [vmem:[#allocation6 + $0x268] sm:$0xff]
    %v2463 = vld [vmem:[#allocation6 + $0x270] sm:$0xff]
    %v2464 = vld [vmem:[#allocation6 + $0x278] sm:$0xff]
    %v2465 = vld [vmem:[#allocation6 + $0x280] sm:$0xff]
    %v2466 = vld [vmem:[#allocation6 + $0x288] sm:$0xff]
    %v2467 = vld [vmem:[#allocation6 + $0x290] sm:$0xff]
    %v2468 = vld [vmem:[#allocation6 + $0x298] sm:$0xff]
    %v2469 = vld [vmem:[#allocation6 + $0x2a0] sm:$0xff]
    %v2470 = vld [vmem:[#allocation6 + $0x2a8] sm:$0xff]
    %v2471 = vld [vmem:[#allocation6 + $0x2b0] sm:$0xff]
    %v2472 = vld [vmem:[#allocation6 + $0x2b8] sm:$0xff]
    %v2473 = vld [vmem:[#allocation6 + $0x2c0] sm:$0xff]
    %v2474 = vld [vmem:[#allocation6 + $0x2c8] sm:$0xff]
    %v2475 = vld [vmem:[#allocation6 + $0x2d0] sm:$0xff]
    %v2476 = vld [vmem:[#allocation6 + $0x2d8] sm:$0xff]
    %v2477 = vld [vmem:[#allocation6 + $0x2e0] sm:$0xff]
    %v2478 = vld [vmem:[#allocation6 + $0x2e8] sm:$0xff]
    %v2479 = vld [vmem:[#allocation6 + $0x2f0] sm:$0xff]
    %v2480 = vld [vmem:[#allocation6 + $0x2f8] sm:$0xff]
    %v2481 = vld [vmem:[#allocation6 + $0x300] sm:$0xff]
    %v2482 = vld [vmem:[#allocation6 + $0x308] sm:$0xff]
    %v2483 = vld [vmem:[#allocation6 + $0x310] sm:$0xff]
    %v2484 = vld [vmem:[#allocation6 + $0x318] sm:$0xff]
    %v2485 = vld [vmem:[#allocation6 + $0x320] sm:$0xff]
    %v2486 = vld [vmem:[#allocation6 + $0x328] sm:$0xff]
    %v2487 = vld [vmem:[#allocation6 + $0x330] sm:$0xff]
    %v2488 = vld [vmem:[#allocation6 + $0x338] sm:$0xff]
    %v2489 = vld [vmem:[#allocation6 + $0x340] sm:$0xff]
    %v2490 = vld [vmem:[#allocation6 + $0x348] sm:$0xff]
    %v2491 = vld [vmem:[#allocation6 + $0x350] sm:$0xff]
    %v2492 = vld [vmem:[#allocation6 + $0x358] sm:$0xff]
    %v2493 = vld [vmem:[#allocation6 + $0x360] sm:$0xff]
    %v2494 = vld [vmem:[#allocation6 + $0x368] sm:$0xff]
    %v2495 = vld [vmem:[#allocation6 + $0x370] sm:$0xff]
    %v2496 = vld [vmem:[#allocation6 + $0x378] sm:$0xff]
    %v2497 = vld [vmem:[#allocation6 + $0x380] sm:$0xff]
    %v2498 = vld [vmem:[#allocation6 + $0x388] sm:$0xff]
    %v2499 = vld [vmem:[#allocation6 + $0x390] sm:$0xff]
    %v2500 = vld [vmem:[#allocation6 + $0x398] sm:$0xff]
    %v2501 = vld [vmem:[#allocation6 + $0x3a0] sm:$0xff]
    %v2502 = vld [vmem:[#allocation6 + $0x3a8] sm:$0xff]
    %v2503 = vld [vmem:[#allocation6 + $0x3b0] sm:$0xff]
    %v2504 = vld [vmem:[#allocation6 + $0x3b8] sm:$0xff]
    %v2505 = vld [vmem:[#allocation6 + $0x3c0] sm:$0xff]
    %v2506 = vld [vmem:[#allocation6 + $0x3c8] sm:$0xff]
    %v2507 = vld [vmem:[#allocation6 + $0x3d0] sm:$0xff]
    %v2508 = vld [vmem:[#allocation6 + $0x3d8] sm:$0xff]
    %v2509 = vld [vmem:[#allocation6 + $0x3e0] sm:$0xff]
    %v2510 = vld [vmem:[#allocation6 + $0x3e8] sm:$0xff]
    %v2511 = vld [vmem:[#allocation6 + $0x3f0] sm:$0xff]
    %v2512 = vld [vmem:[#allocation6 + $0x3f8] sm:$0xff]
    %v2641 = vunpack.c.l.b16 %v2385
    %v2642 = vunpack.c.h.b16 %v2385
    %v2643 = vunpack.c.l.b16 %v2386
    %v2644 = vunpack.c.h.b16 %v2386
    %v2645 = vunpack.c.l.b16 %v2387
    %v2646 = vunpack.c.h.b16 %v2387
    %v2647 = vunpack.c.l.b16 %v2388
    %v2648 = vunpack.c.h.b16 %v2388
    %v2649 = vunpack.c.l.b16 %v2389
    %v2650 = vunpack.c.h.b16 %v2389
    %v2651 = vunpack.c.l.b16 %v2390
    %v2652 = vunpack.c.h.b16 %v2390
    %v2653 = vunpack.c.l.b16 %v2391
    %v2654 = vunpack.c.h.b16 %v2391
    %v2655 = vunpack.c.l.b16 %v2392
    %v2656 = vunpack.c.h.b16 %v2392
    %v2657 = vunpack.c.l.b16 %v2393
    %v2658 = vunpack.c.h.b16 %v2393
    %v2659 = vunpack.c.l.b16 %v2394
    %v2660 = vunpack.c.h.b16 %v2394
    %v2661 = vunpack.c.l.b16 %v2395
    %v2662 = vunpack.c.h.b16 %v2395
    %v2663 = vunpack.c.l.b16 %v2396
    %v2664 = vunpack.c.h.b16 %v2396
    %v2665 = vunpack.c.l.b16 %v2397
    %v2666 = vunpack.c.h.b16 %v2397
    %v2667 = vunpack.c.l.b16 %v2398
    %v2668 = vunpack.c.h.b16 %v2398
    %v2669 = vunpack.c.l.b16 %v2399
    %v2670 = vunpack.c.h.b16 %v2399
    %v2671 = vunpack.c.l.b16 %v2400
    %v2672 = vunpack.c.h.b16 %v2400
    %v2673 = vunpack.c.l.b16 %v2401
    %v2674 = vunpack.c.h.b16 %v2401
    %v2675 = vunpack.c.l.b16 %v2402
    %v2676 = vunpack.c.h.b16 %v2402
    %v2677 = vunpack.c.l.b16 %v2403
    %v2678 = vunpack.c.h.b16 %v2403
    %v2679 = vunpack.c.l.b16 %v2404
    %v2680 = vunpack.c.h.b16 %v2404
    %v2681 = vunpack.c.l.b16 %v2405
    %v2682 = vunpack.c.h.b16 %v2405
    %v2683 = vunpack.c.l.b16 %v2406
    %v2684 = vunpack.c.h.b16 %v2406
    %v2685 = vunpack.c.l.b16 %v2407
    %v2686 = vunpack.c.h.b16 %v2407
    %v2687 = vunpack.c.l.b16 %v2408
    %v2688 = vunpack.c.h.b16 %v2408
    %v2689 = vunpack.c.l.b16 %v2409
    %v2690 = vunpack.c.h.b16 %v2409
    %v2691 = vunpack.c.l.b16 %v2410
    %v2692 = vunpack.c.h.b16 %v2410
    %v2693 = vunpack.c.l.b16 %v2411
    %v2694 = vunpack.c.h.b16 %v2411
    %v2695 = vunpack.c.l.b16 %v2412
    %v2696 = vunpack.c.h.b16 %v2412
    %v2697 = vunpack.c.l.b16 %v2413
    %v2698 = vunpack.c.h.b16 %v2413
    %v2699 = vunpack.c.l.b16 %v2414
    %v2700 = vunpack.c.h.b16 %v2414
    %v2701 = vunpack.c.l.b16 %v2415
    %v2702 = vunpack.c.h.b16 %v2415
    %v2703 = vunpack.c.l.b16 %v2416
    %v2704 = vunpack.c.h.b16 %v2416
    %v2705 = vunpack.c.l.b16 %v2417
    %v2706 = vunpack.c.h.b16 %v2417
    %v2707 = vunpack.c.l.b16 %v2418
    %v2708 = vunpack.c.h.b16 %v2418
    %v2709 = vunpack.c.l.b16 %v2419
    %v2710 = vunpack.c.h.b16 %v2419
    %v2711 = vunpack.c.l.b16 %v2420
    %v2712 = vunpack.c.h.b16 %v2420
    %v2713 = vunpack.c.l.b16 %v2421
    %v2714 = vunpack.c.h.b16 %v2421
    %v2715 = vunpack.c.l.b16 %v2422
    %v2716 = vunpack.c.h.b16 %v2422
    %v2717 = vunpack.c.l.b16 %v2423
    %v2718 = vunpack.c.h.b16 %v2423
    %v2719 = vunpack.c.l.b16 %v2424
    %v2720 = vunpack.c.h.b16 %v2424
    %v2721 = vunpack.c.l.b16 %v2425
    %v2722 = vunpack.c.h.b16 %v2425
    %v2723 = vunpack.c.l.b16 %v2426
    %v2724 = vunpack.c.h.b16 %v2426
    %v2725 = vunpack.c.l.b16 %v2427
    %v2726 = vunpack.c.h.b16 %v2427
    %v2727 = vunpack.c.l.b16 %v2428
    %v2728 = vunpack.c.h.b16 %v2428
    %v2729 = vunpack.c.l.b16 %v2429
    %v2730 = vunpack.c.h.b16 %v2429
    %v2731 = vunpack.c.l.b16 %v2430
    %v2732 = vunpack.c.h.b16 %v2430
    %v2733 = vunpack.c.l.b16 %v2431
    %v2734 = vunpack.c.h.b16 %v2431
    %v2735 = vunpack.c.l.b16 %v2432
    %v2736 = vunpack.c.h.b16 %v2432
    %v2737 = vunpack.c.l.b16 %v2433
    %v2738 = vunpack.c.h.b16 %v2433
    %v2739 = vunpack.c.l.b16 %v2434
    %v2740 = vunpack.c.h.b16 %v2434
    %v2741 = vunpack.c.l.b16 %v2435
    %v2742 = vunpack.c.h.b16 %v2435
    %v2743 = vunpack.c.l.b16 %v2436
    %v2744 = vunpack.c.h.b16 %v2436
    %v2745 = vunpack.c.l.b16 %v2437
    %v2746 = vunpack.c.h.b16 %v2437
    %v2747 = vunpack.c.l.b16 %v2438
    %v2748 = vunpack.c.h.b16 %v2438
    %v2749 = vunpack.c.l.b16 %v2439
    %v2750 = vunpack.c.h.b16 %v2439
    %v2751 = vunpack.c.l.b16 %v2440
    %v2752 = vunpack.c.h.b16 %v2440
    %v2753 = vunpack.c.l.b16 %v2441
    %v2754 = vunpack.c.h.b16 %v2441
    %v2755 = vunpack.c.l.b16 %v2442
    %v2756 = vunpack.c.h.b16 %v2442
    %v2757 = vunpack.c.l.b16 %v2443
    %v2758 = vunpack.c.h.b16 %v2443
    %v2759 = vunpack.c.l.b16 %v2444
    %v2760 = vunpack.c.h.b16 %v2444
    %v2761 = vunpack.c.l.b16 %v2445
    %v2762 = vunpack.c.h.b16 %v2445
    %v2763 = vunpack.c.l.b16 %v2446
    %v2764 = vunpack.c.h.b16 %v2446
    %v2765 = vunpack.c.l.b16 %v2447
    %v2766 = vunpack.c.h.b16 %v2447
    %v2767 = vunpack.c.l.b16 %v2448
    %v2768 = vunpack.c.h.b16 %v2448
    %v2769 = vunpack.c.l.b16 %v2449
    %v2770 = vunpack.c.h.b16 %v2449
    %v2771 = vunpack.c.l.b16 %v2450
    %v2772 = vunpack.c.h.b16 %v2450
    %v2773 = vunpack.c.l.b16 %v2451
    %v2774 = vunpack.c.h.b16 %v2451
    %v2775 = vunpack.c.l.b16 %v2452
    %v2776 = vunpack.c.h.b16 %v2452
    %v2777 = vunpack.c.l.b16 %v2453
    %v2778 = vunpack.c.h.b16 %v2453
    %v2779 = vunpack.c.l.b16 %v2454
    %v2780 = vunpack.c.h.b16 %v2454
    %v2781 = vunpack.c.l.b16 %v2455
    %v2782 = vunpack.c.h.b16 %v2455
    %v2783 = vunpack.c.l.b16 %v2456
    %v2784 = vunpack.c.h.b16 %v2456
    %v2785 = vunpack.c.l.b16 %v2457
    %v2786 = vunpack.c.h.b16 %v2457
    %v2787 = vunpack.c.l.b16 %v2458
    %v2788 = vunpack.c.h.b16 %v2458
    %v2789 = vunpack.c.l.b16 %v2459
    %v2790 = vunpack.c.h.b16 %v2459
    %v2791 = vunpack.c.l.b16 %v2460
    %v2792 = vunpack.c.h.b16 %v2460
    %v2793 = vunpack.c.l.b16 %v2461
    %v2794 = vunpack.c.h.b16 %v2461
    %v2795 = vunpack.c.l.b16 %v2462
    %v2796 = vunpack.c.h.b16 %v2462
    %v2797 = vunpack.c.l.b16 %v2463
    %v2798 = vunpack.c.h.b16 %v2463
    %v2799 = vunpack.c.l.b16 %v2464
    %v2800 = vunpack.c.h.b16 %v2464
    %v2801 = vunpack.c.l.b16 %v2465
    %v2802 = vunpack.c.h.b16 %v2465
    %v2803 = vunpack.c.l.b16 %v2466
    %v2804 = vunpack.c.h.b16 %v2466
    %v2805 = vunpack.c.l.b16 %v2467
    %v2806 = vunpack.c.h.b16 %v2467
    %v2807 = vunpack.c.l.b16 %v2468
    %v2808 = vunpack.c.h.b16 %v2468
    %v2809 = vunpack.c.l.b16 %v2469
    %v2810 = vunpack.c.h.b16 %v2469
    %v2811 = vunpack.c.l.b16 %v2470
    %v2812 = vunpack.c.h.b16 %v2470
    %v2813 = vunpack.c.l.b16 %v2471
    %v2814 = vunpack.c.h.b16 %v2471
    %v2815 = vunpack.c.l.b16 %v2472
    %v2816 = vunpack.c.h.b16 %v2472
    %v2817 = vunpack.c.l.b16 %v2473
    %v2818 = vunpack.c.h.b16 %v2473
    %v2819 = vunpack.c.l.b16 %v2474
    %v2820 = vunpack.c.h.b16 %v2474
    %v2821 = vunpack.c.l.b16 %v2475
    %v2822 = vunpack.c.h.b16 %v2475
    %v2823 = vunpack.c.l.b16 %v2476
    %v2824 = vunpack.c.h.b16 %v2476
    %v2825 = vunpack.c.l.b16 %v2477
    %v2826 = vunpack.c.h.b16 %v2477
    %v2827 = vunpack.c.l.b16 %v2478
    %v2828 = vunpack.c.h.b16 %v2478
    %v2829 = vunpack.c.l.b16 %v2479
    %v2830 = vunpack.c.h.b16 %v2479
    %v2831 = vunpack.c.l.b16 %v2480
    %v2832 = vunpack.c.h.b16 %v2480
    %v2833 = vunpack.c.l.b16 %v2481
    %v2834 = vunpack.c.h.b16 %v2481
    %v2835 = vunpack.c.l.b16 %v2482
    %v2836 = vunpack.c.h.b16 %v2482
    %v2837 = vunpack.c.l.b16 %v2483
    %v2838 = vunpack.c.h.b16 %v2483
    %v2839 = vunpack.c.l.b16 %v2484
    %v2840 = vunpack.c.h.b16 %v2484
    %v2841 = vunpack.c.l.b16 %v2485
    %v2842 = vunpack.c.h.b16 %v2485
    %v2843 = vunpack.c.l.b16 %v2486
    %v2844 = vunpack.c.h.b16 %v2486
    %v2845 = vunpack.c.l.b16 %v2487
    %v2846 = vunpack.c.h.b16 %v2487
    %v2847 = vunpack.c.l.b16 %v2488
    %v2848 = vunpack.c.h.b16 %v2488
    %v2849 = vunpack.c.l.b16 %v2489
    %v2850 = vunpack.c.h.b16 %v2489
    %v2851 = vunpack.c.l.b16 %v2490
    %v2852 = vunpack.c.h.b16 %v2490
    %v2853 = vunpack.c.l.b16 %v2491
    %v2854 = vunpack.c.h.b16 %v2491
    %v2855 = vunpack.c.l.b16 %v2492
    %v2856 = vunpack.c.h.b16 %v2492
    %v2857 = vunpack.c.l.b16 %v2493
    %v2858 = vunpack.c.h.b16 %v2493
    %v2859 = vunpack.c.l.b16 %v2494
    %v2860 = vunpack.c.h.b16 %v2494
    %v2861 = vunpack.c.l.b16 %v2495
    %v2862 = vunpack.c.h.b16 %v2495
    %v2863 = vunpack.c.l.b16 %v2496
    %v2864 = vunpack.c.h.b16 %v2496
    %v2865 = vunpack.c.l.b16 %v2497
    %v2866 = vunpack.c.h.b16 %v2497
    %v2867 = vunpack.c.l.b16 %v2498
    %v2868 = vunpack.c.h.b16 %v2498
    %v2869 = vunpack.c.l.b16 %v2499
    %v2870 = vunpack.c.h.b16 %v2499
    %v2871 = vunpack.c.l.b16 %v2500
    %v2872 = vunpack.c.h.b16 %v2500
    %v2873 = vunpack.c.l.b16 %v2501
    %v2874 = vunpack.c.h.b16 %v2501
    %v2875 = vunpack.c.l.b16 %v2502
    %v2876 = vunpack.c.h.b16 %v2502
    %v2877 = vunpack.c.l.b16 %v2503
    %v2878 = vunpack.c.h.b16 %v2503
    %v2879 = vunpack.c.l.b16 %v2504
    %v2880 = vunpack.c.h.b16 %v2504
    %v2881 = vunpack.c.l.b16 %v2505
    %v2882 = vunpack.c.h.b16 %v2505
    %v2883 = vunpack.c.l.b16 %v2506
    %v2884 = vunpack.c.h.b16 %v2506
    %v2885 = vunpack.c.l.b16 %v2507
    %v2886 = vunpack.c.h.b16 %v2507
    %v2887 = vunpack.c.l.b16 %v2508
    %v2888 = vunpack.c.h.b16 %v2508
    %v2889 = vunpack.c.l.b16 %v2509
    %v2890 = vunpack.c.h.b16 %v2509
    %v2891 = vunpack.c.l.b16 %v2510
    %v2892 = vunpack.c.h.b16 %v2510
    %v2893 = vunpack.c.l.b16 %v2511
    %v2894 = vunpack.c.h.b16 %v2511
    %v2895 = vunpack.c.l.b16 %v2512
    %v2896 = vunpack.c.h.b16 %v2512
    %v2897 = vpack.c.b16 %v2645, %v2641
    %v2898 = vpack.c.b16 %v2646, %v2642
    %v2899 = vpack.c.b16 %v2647, %v2643
    %v2900 = vpack.c.b16 %v2648, %v2644
    %v2901 = vpack.c.b16 %v2653, %v2649
    %v2902 = vpack.c.b16 %v2654, %v2650
    %v2903 = vpack.c.b16 %v2655, %v2651
    %v2904 = vpack.c.b16 %v2656, %v2652
    %v2905 = vpack.c.b16 %v2661, %v2657
    %v2906 = vpack.c.b16 %v2662, %v2658
    %v2907 = vpack.c.b16 %v2663, %v2659
    %v2908 = vpack.c.b16 %v2664, %v2660
    %v2909 = vpack.c.b16 %v2669, %v2665
    %v2910 = vpack.c.b16 %v2670, %v2666
    %v2911 = vpack.c.b16 %v2671, %v2667
    %v2912 = vpack.c.b16 %v2672, %v2668
    %v2913 = vpack.c.b16 %v2677, %v2673
    %v2914 = vpack.c.b16 %v2678, %v2674
    %v2915 = vpack.c.b16 %v2679, %v2675
    %v2916 = vpack.c.b16 %v2680, %v2676
    %v2917 = vpack.c.b16 %v2685, %v2681
    %v2918 = vpack.c.b16 %v2686, %v2682
    %v2919 = vpack.c.b16 %v2687, %v2683
    %v2920 = vpack.c.b16 %v2688, %v2684
    %v2921 = vpack.c.b16 %v2693, %v2689
    %v2922 = vpack.c.b16 %v2694, %v2690
    %v2923 = vpack.c.b16 %v2695, %v2691
    %v2924 = vpack.c.b16 %v2696, %v2692
    %v2925 = vpack.c.b16 %v2701, %v2697
    %v2926 = vpack.c.b16 %v2702, %v2698
    %v2927 = vpack.c.b16 %v2703, %v2699
    %v2928 = vpack.c.b16 %v2704, %v2700
    %v2929 = vpack.c.b16 %v2709, %v2705
    %v2930 = vpack.c.b16 %v2710, %v2706
    %v2931 = vpack.c.b16 %v2711, %v2707
    %v2932 = vpack.c.b16 %v2712, %v2708
    %v2933 = vpack.c.b16 %v2717, %v2713
    %v2934 = vpack.c.b16 %v2718, %v2714
    %v2935 = vpack.c.b16 %v2719, %v2715
    %v2936 = vpack.c.b16 %v2720, %v2716
    %v2937 = vpack.c.b16 %v2725, %v2721
    %v2938 = vpack.c.b16 %v2726, %v2722
    %v2939 = vpack.c.b16 %v2727, %v2723
    %v2940 = vpack.c.b16 %v2728, %v2724
    %v2941 = vpack.c.b16 %v2733, %v2729
    %v2942 = vpack.c.b16 %v2734, %v2730
    %v2943 = vpack.c.b16 %v2735, %v2731
    %v2944 = vpack.c.b16 %v2736, %v2732
    %v2945 = vpack.c.b16 %v2741, %v2737
    %v2946 = vpack.c.b16 %v2742, %v2738
    %v2947 = vpack.c.b16 %v2743, %v2739
    %v2948 = vpack.c.b16 %v2744, %v2740
    %v2949 = vpack.c.b16 %v2749, %v2745
    %v2950 = vpack.c.b16 %v2750, %v2746
    %v2951 = vpack.c.b16 %v2751, %v2747
    %v2952 = vpack.c.b16 %v2752, %v2748
    %v2953 = vpack.c.b16 %v2757, %v2753
    %v2954 = vpack.c.b16 %v2758, %v2754
    %v2955 = vpack.c.b16 %v2759, %v2755
    %v2956 = vpack.c.b16 %v2760, %v2756
    %v2957 = vpack.c.b16 %v2765, %v2761
    %v2958 = vpack.c.b16 %v2766, %v2762
    %v2959 = vpack.c.b16 %v2767, %v2763
    %v2960 = vpack.c.b16 %v2768, %v2764
    %v2961 = vpack.c.b16 %v2773, %v2769
    %v2962 = vpack.c.b16 %v2774, %v2770
    %v2963 = vpack.c.b16 %v2775, %v2771
    %v2964 = vpack.c.b16 %v2776, %v2772
    %v2965 = vpack.c.b16 %v2781, %v2777
    %v2966 = vpack.c.b16 %v2782, %v2778
    %v2967 = vpack.c.b16 %v2783, %v2779
    %v2968 = vpack.c.b16 %v2784, %v2780
    %v2969 = vpack.c.b16 %v2789, %v2785
    %v2970 = vpack.c.b16 %v2790, %v2786
    %v2971 = vpack.c.b16 %v2791, %v2787
    %v2972 = vpack.c.b16 %v2792, %v2788
    %v2973 = vpack.c.b16 %v2797, %v2793
    %v2974 = vpack.c.b16 %v2798, %v2794
    %v2975 = vpack.c.b16 %v2799, %v2795
    %v2976 = vpack.c.b16 %v2800, %v2796
    %v2977 = vpack.c.b16 %v2805, %v2801
    %v2978 = vpack.c.b16 %v2806, %v2802
    %v2979 = vpack.c.b16 %v2807, %v2803
    %v2980 = vpack.c.b16 %v2808, %v2804
    %v2981 = vpack.c.b16 %v2813, %v2809
    %v2982 = vpack.c.b16 %v2814, %v2810
    %v2983 = vpack.c.b16 %v2815, %v2811
    %v2984 = vpack.c.b16 %v2816, %v2812
    %v2985 = vpack.c.b16 %v2821, %v2817
    %v2986 = vpack.c.b16 %v2822, %v2818
    %v2987 = vpack.c.b16 %v2823, %v2819
    %v2988 = vpack.c.b16 %v2824, %v2820
    %v2989 = vpack.c.b16 %v2829, %v2825
    %v2990 = vpack.c.b16 %v2830, %v2826
    %v2991 = vpack.c.b16 %v2831, %v2827
    %v2992 = vpack.c.b16 %v2832, %v2828
    %v2993 = vpack.c.b16 %v2837, %v2833
    %v2994 = vpack.c.b16 %v2838, %v2834
    %v2995 = vpack.c.b16 %v2839, %v2835
    %v2996 = vpack.c.b16 %v2840, %v2836
    %v2997 = vpack.c.b16 %v2845, %v2841
    %v2998 = vpack.c.b16 %v2846, %v2842
    %v2999 = vpack.c.b16 %v2847, %v2843
    %v3000 = vpack.c.b16 %v2848, %v2844
    %v3001 = vpack.c.b16 %v2853, %v2849
    %v3002 = vpack.c.b16 %v2854, %v2850
    %v3003 = vpack.c.b16 %v2855, %v2851
    %v3004 = vpack.c.b16 %v2856, %v2852
    %v3005 = vpack.c.b16 %v2861, %v2857
    %v3006 = vpack.c.b16 %v2862, %v2858
    %v3007 = vpack.c.b16 %v2863, %v2859
    %v3008 = vpack.c.b16 %v2864, %v2860
    %v3009 = vpack.c.b16 %v2869, %v2865
    %v3010 = vpack.c.b16 %v2870, %v2866
    %v3011 = vpack.c.b16 %v2871, %v2867
    %v3012 = vpack.c.b16 %v2872, %v2868
    %v3013 = vpack.c.b16 %v2877, %v2873
    %v3014 = vpack.c.b16 %v2878, %v2874
    %v3015 = vpack.c.b16 %v2879, %v2875
    %v3016 = vpack.c.b16 %v2880, %v2876
    %v3017 = vpack.c.b16 %v2885, %v2881
    %v3018 = vpack.c.b16 %v2886, %v2882
    %v3019 = vpack.c.b16 %v2887, %v2883
    %v3020 = vpack.c.b16 %v2888, %v2884
    %v3021 = vpack.c.b16 %v2893, %v2889
    %v3022 = vpack.c.b16 %v2894, %v2890
    %v3023 = vpack.c.b16 %v2895, %v2891
    %v3024 = vpack.c.b16 %v2896, %v2892
    %3153 = vmatpush.bf16.msra.mxu0 %v2925
    %3154 = vmatpush.bf16.msra.mxu0 %v2921
    %3155 = vmatpush.bf16.msra.mxu0 %v2917
    %3156 = vmatpush.bf16.msra.mxu0 %v2913
    %3157 = vmatpush.bf16.msra.mxu0 %v2909
    %3158 = vmatpush.bf16.msra.mxu0 %v2905
    %3159 = vmatpush.bf16.msra.mxu0 %v2901
    %3160 = vmatpush.bf16.msra.mxu0 %v2897
    %3161 = vmatmul.bf16.gmra.mxu0 %v2381
    %v3162 = vpop.f32.mrf.mxu0
    %v3163 = vadd.f32 0.0, %v3162
    %v3164 = vpop.f32.mrf.mxu0
    %3165 = vdwg.mxu0
    %3166 = vmatpush.bf16.msra.mxu0 %v2957
    %3167 = vmatpush.bf16.msra.mxu0 %v2953
    %3168 = vmatpush.bf16.msra.mxu0 %v2949
    %3169 = vmatpush.bf16.msra.mxu0 %v2945
    %3170 = vmatpush.bf16.msra.mxu0 %v2941
    %3171 = vmatpush.bf16.msra.mxu0 %v2937
    %3172 = vmatpush.bf16.msra.mxu0 %v2933
    %3173 = vmatpush.bf16.msra.mxu0 %v2929
    %3174 = vmatmul.bf16.gmra.mxu0 %v2382
    %v3175 = vpop.f32.mrf.mxu0
    %v3176 = vadd.f32 %v3163, %v3175
    %v3177 = vpop.f32.mrf.mxu0
    %3178 = vdwg.mxu0
    %3179 = vmatpush.bf16.msra.mxu0 %v2989
    %3180 = vmatpush.bf16.msra.mxu0 %v2985
    %3181 = vmatpush.bf16.msra.mxu0 %v2981
    %3182 = vmatpush.bf16.msra.mxu0 %v2977
    %3183 = vmatpush.bf16.msra.mxu0 %v2973
    %3184 = vmatpush.bf16.msra.mxu0 %v2969
    %3185 = vmatpush.bf16.msra.mxu0 %v2965
    %3186 = vmatpush.bf16.msra.mxu0 %v2961
    %3187 = vmatmul.bf16.gmra.mxu0 %v2383
    %v3188 = vpop.f32.mrf.mxu0
    %v3189 = vadd.f32 %v3176, %v3188
    %v3190 = vpop.f32.mrf.mxu0
    %3191 = vdwg.mxu0
    %3192 = vmatpush.bf16.msra.mxu0 %v3021
    %3193 = vmatpush.bf16.msra.mxu0 %v3017
    %3194 = vmatpush.bf16.msra.mxu0 %v3013
    %3195 = vmatpush.bf16.msra.mxu0 %v3009
    %3196 = vmatpush.bf16.msra.mxu0 %v3005
    %3197 = vmatpush.bf16.msra.mxu0 %v3001
    %3198 = vmatpush.bf16.msra.mxu0 %v2997
    %3199 = vmatpush.bf16.msra.mxu0 %v2993
    %3200 = vmatmul.bf16.gmra.mxu0 %v2384
    %v3201 = vpop.f32.mrf.mxu0
    %v3202 = vadd.f32 %v3189, %v3201
    %v3203 = vpop.f32.mrf.mxu0
    %3204 = vdwg.mxu0
    %3205 = vmatpush.bf16.msra.mxu0 %v2926
    %3206 = vmatpush.bf16.msra.mxu0 %v2922
    %3207 = vmatpush.bf16.msra.mxu0 %v2918
    %3208 = vmatpush.bf16.msra.mxu0 %v2914
    %3209 = vmatpush.bf16.msra.mxu0 %v2910
    %3210 = vmatpush.bf16.msra.mxu0 %v2906
    %3211 = vmatpush.bf16.msra.mxu0 %v2902
    %3212 = vmatpush.bf16.msra.mxu0 %v2898
    %3213 = vmatmul.bf16.gmra.mxu0 %v2381
    %v3214 = vpop.f32.mrf.mxu0
    %v3215 = vadd.f32 0.0, %v3214
    %v3216 = vpop.f32.mrf.mxu0
    %3217 = vdwg.mxu0
    %3218 = vmatpush.bf16.msra.mxu0 %v2958
    %3219 = vmatpush.bf16.msra.mxu0 %v2954
    %3220 = vmatpush.bf16.msra.mxu0 %v2950
    %3221 = vmatpush.bf16.msra.mxu0 %v2946
    %3222 = vmatpush.bf16.msra.mxu0 %v2942
    %3223 = vmatpush.bf16.msra.mxu0 %v2938
    %3224 = vmatpush.bf16.msra.mxu0 %v2934
    %3225 = vmatpush.bf16.msra.mxu0 %v2930
    %3226 = vmatmul.bf16.gmra.mxu0 %v2382
    %v3227 = vpop.f32.mrf.mxu0
    %v3228 = vadd.f32 %v3215, %v3227
    %v3229 = vpop.f32.mrf.mxu0
    %3230 = vdwg.mxu0
    %3231 = vmatpush.bf16.msra.mxu0 %v2990
    %3232 = vmatpush.bf16.msra.mxu0 %v2986
    %3233 = vmatpush.bf16.msra.mxu0 %v2982
    %3234 = vmatpush.bf16.msra.mxu0 %v2978
    %3235 = vmatpush.bf16.msra.mxu0 %v2974
    %3236 = vmatpush.bf16.msra.mxu0 %v2970
    %3237 = vmatpush.bf16.msra.mxu0 %v2966
    %3238 = vmatpush.bf16.msra.mxu0 %v2962
    %3239 = vmatmul.bf16.gmra.mxu0 %v2383
    %v3240 = vpop.f32.mrf.mxu0
    %v3241 = vadd.f32 %v3228, %v3240
    %v3242 = vpop.f32.mrf.mxu0
    %3243 = vdwg.mxu0
    %3244 = vmatpush.bf16.msra.mxu0 %v3022
    %3245 = vmatpush.bf16.msra.mxu0 %v3018
    %3246 = vmatpush.bf16.msra.mxu0 %v3014
    %3247 = vmatpush.bf16.msra.mxu0 %v3010
    %3248 = vmatpush.bf16.msra.mxu0 %v3006
    %3249 = vmatpush.bf16.msra.mxu0 %v3002
    %3250 = vmatpush.bf16.msra.mxu0 %v2998
    %3251 = vmatpush.bf16.msra.mxu0 %v2994
    %3252 = vmatmul.bf16.gmra.mxu0 %v2384
    %v3253 = vpop.f32.mrf.mxu0
    %v3254 = vadd.f32 %v3241, %v3253
    %v3255 = vpop.f32.mrf.mxu0
    %3256 = vdwg.mxu0
    %3257 = vmatpush.bf16.msra.mxu0 %v2927
    %3258 = vmatpush.bf16.msra.mxu0 %v2923
    %3259 = vmatpush.bf16.msra.mxu0 %v2919
    %3260 = vmatpush.bf16.msra.mxu0 %v2915
    %3261 = vmatpush.bf16.msra.mxu0 %v2911
    %3262 = vmatpush.bf16.msra.mxu0 %v2907
    %3263 = vmatpush.bf16.msra.mxu0 %v2903
    %3264 = vmatpush.bf16.msra.mxu0 %v2899
    %3265 = vmatmul.bf16.gmra.mxu0 %v2381
    %v3266 = vpop.f32.mrf.mxu0
    %v3267 = vadd.f32 0.0, %v3266
    %v3268 = vpop.f32.mrf.mxu0
    %3269 = vdwg.mxu0
    %3270 = vmatpush.bf16.msra.mxu0 %v2959
    %3271 = vmatpush.bf16.msra.mxu0 %v2955
    %3272 = vmatpush.bf16.msra.mxu0 %v2951
    %3273 = vmatpush.bf16.msra.mxu0 %v2947
    %3274 = vmatpush.bf16.msra.mxu0 %v2943
    %3275 = vmatpush.bf16.msra.mxu0 %v2939
    %3276 = vmatpush.bf16.msra.mxu0 %v2935
    %3277 = vmatpush.bf16.msra.mxu0 %v2931
    %3278 = vmatmul.bf16.gmra.mxu0 %v2382
    %v3279 = vpop.f32.mrf.mxu0
    %v3280 = vadd.f32 %v3267, %v3279
    %v3281 = vpop.f32.mrf.mxu0
    %3282 = vdwg.mxu0
    %3283 = vmatpush.bf16.msra.mxu0 %v2991
    %3284 = vmatpush.bf16.msra.mxu0 %v2987
    %3285 = vmatpush.bf16.msra.mxu0 %v2983
    %3286 = vmatpush.bf16.msra.mxu0 %v2979
    %3287 = vmatpush.bf16.msra.mxu0 %v2975
    %3288 = vmatpush.bf16.msra.mxu0 %v2971
    %3289 = vmatpush.bf16.msra.mxu0 %v2967
    %3290 = vmatpush.bf16.msra.mxu0 %v2963
    %3291 = vmatmul.bf16.gmra.mxu0 %v2383
    %v3292 = vpop.f32.mrf.mxu0
    %v3293 = vadd.f32 %v3280, %v3292
    %v3294 = vpop.f32.mrf.mxu0
    %3295 = vdwg.mxu0
    %3296 = vmatpush.bf16.msra.mxu0 %v3023
    %3297 = vmatpush.bf16.msra.mxu0 %v3019
    %3298 = vmatpush.bf16.msra.mxu0 %v3015
    %3299 = vmatpush.bf16.msra.mxu0 %v3011
    %3300 = vmatpush.bf16.msra.mxu0 %v3007
    %3301 = vmatpush.bf16.msra.mxu0 %v3003
    %3302 = vmatpush.bf16.msra.mxu0 %v2999
    %3303 = vmatpush.bf16.msra.mxu0 %v2995
    %3304 = vmatmul.bf16.gmra.mxu0 %v2384
    %v3305 = vpop.f32.mrf.mxu0
    %v3306 = vadd.f32 %v3293, %v3305
    %v3307 = vpop.f32.mrf.mxu0
    %3308 = vdwg.mxu0
    %3309 = vmatpush.bf16.msra.mxu0 %v2928
    %3310 = vmatpush.bf16.msra.mxu0 %v2924
    %3311 = vmatpush.bf16.msra.mxu0 %v2920
    %3312 = vmatpush.bf16.msra.mxu0 %v2916
    %3313 = vmatpush.bf16.msra.mxu0 %v2912
    %3314 = vmatpush.bf16.msra.mxu0 %v2908
    %3315 = vmatpush.bf16.msra.mxu0 %v2904
    %3316 = vmatpush.bf16.msra.mxu0 %v2900
    %3317 = vmatmul.bf16.gmra.mxu0 %v2381
    %v3318 = vpop.f32.mrf.mxu0
    %v3319 = vadd.f32 0.0, %v3318
    %v3320 = vpop.f32.mrf.mxu0
    %3321 = vdwg.mxu0
    %3322 = vmatpush.bf16.msra.mxu0 %v2960
    %3323 = vmatpush.bf16.msra.mxu0 %v2956
    %3324 = vmatpush.bf16.msra.mxu0 %v2952
    %3325 = vmatpush.bf16.msra.mxu0 %v2948
    %3326 = vmatpush.bf16.msra.mxu0 %v2944
    %3327 = vmatpush.bf16.msra.mxu0 %v2940
    %3328 = vmatpush.bf16.msra.mxu0 %v2936
    %3329 = vmatpush.bf16.msra.mxu0 %v2932
    %3330 = vmatmul.bf16.gmra.mxu0 %v2382
    %v3331 = vpop.f32.mrf.mxu0
    %v3332 = vadd.f32 %v3319, %v3331
    %v3333 = vpop.f32.mrf.mxu0
    %3334 = vdwg.mxu0
    %3335 = vmatpush.bf16.msra.mxu0 %v2992
    %3336 = vmatpush.bf16.msra.mxu0 %v2988
    %3337 = vmatpush.bf16.msra.mxu0 %v2984
    %3338 = vmatpush.bf16.msra.mxu0 %v2980
    %3339 = vmatpush.bf16.msra.mxu0 %v2976
    %3340 = vmatpush.bf16.msra.mxu0 %v2972
    %3341 = vmatpush.bf16.msra.mxu0 %v2968
    %3342 = vmatpush.bf16.msra.mxu0 %v2964
    %3343 = vmatmul.bf16.gmra.mxu0 %v2383
    %v3344 = vpop.f32.mrf.mxu0
    %v3345 = vadd.f32 %v3332, %v3344
    %v3346 = vpop.f32.mrf.mxu0
    %3347 = vdwg.mxu0
    %3348 = vmatpush.bf16.msra.mxu0 %v3024
    %3349 = vmatpush.bf16.msra.mxu0 %v3020
    %3350 = vmatpush.bf16.msra.mxu0 %v3016
    %3351 = vmatpush.bf16.msra.mxu0 %v3012
    %3352 = vmatpush.bf16.msra.mxu0 %v3008
    %3353 = vmatpush.bf16.msra.mxu0 %v3004
    %3354 = vmatpush.bf16.msra.mxu0 %v3000
    %3355 = vmatpush.bf16.msra.mxu0 %v2996
    %3356 = vmatmul.bf16.gmra.mxu0 %v2384
    %v3357 = vpop.f32.mrf.mxu0
    %v3358 = vadd.f32 %v3345, %v3357
    %v3359 = vpop.f32.mrf.mxu0
    %3360 = vdwg.mxu0
    %v3361 = vmax.f32 %v3202, %v3254
    %v3362 = vmax.f32 %v3306, %v3358
    %v3363 = vmax.f32 %v3361, %v3362
    %v3364 = vld [vmem:[#allocation7] sm:$0x1]
    %v3366 = vperm.slane %v3364, 0
    %v3368 = vadd.f32 %v3363, %v3366
    %v3369 = vmax.f32 %v3368, 0.0
    %v3370 = vpack.c.bf16 %v3369, %v3369
    %v3371 = vld [vmem:[%s5] sm:$0xf]
    %v3372 = vld [vmem:[%s5 + $0x4] sm:$0xf]
    %v3373 = vld [vmem:[%s5 + $0x8] sm:$0xf]
    %v3374 = vld [vmem:[%s5 + $0xc] sm:$0xf]
    %v3375 = vld [vmem:[%s5 + $0x10] sm:$0xf]
    %v3376 = vld [vmem:[%s5 + $0x14] sm:$0xf]
    %v3377 = vld [vmem:[%s5 + $0x18] sm:$0xf]
    %v3378 = vld [vmem:[%s5 + $0x1c] sm:$0xf]
    %v3379 = vld [vmem:[%s5 + $0x20] sm:$0xf]
    %v3380 = vld [vmem:[%s5 + $0x24] sm:$0xf]
    %v3381 = vld [vmem:[%s5 + $0x28] sm:$0xf]
    %v3382 = vld [vmem:[%s5 + $0x2c] sm:$0xf]
    %v3383 = vld [vmem:[%s5 + $0x30] sm:$0xf]
    %v3384 = vld [vmem:[%s5 + $0x34] sm:$0xf]
    %v3385 = vld [vmem:[%s5 + $0x38] sm:$0xf]
    %v3386 = vld [vmem:[%s5 + $0x3c] sm:$0xf]
    %v3387 = vld [vmem:[#allocation9] sm:$0x1]
    %v3389 = vperm.slane %v3387, 0
    %v3407 = vunpack.c.l.b16 %v3371
    %v3408 = vunpack.c.l.b16 %v3372
    %v3409 = vunpack.c.l.b16 %v3373
    %v3410 = vunpack.c.l.b16 %v3374
    %v3411 = vunpack.c.l.b16 %v3375
    %v3412 = vunpack.c.l.b16 %v3376
    %v3413 = vunpack.c.l.b16 %v3377
    %v3414 = vunpack.c.l.b16 %v3378
    %v3415 = vunpack.c.l.b16 %v3379
    %v3416 = vunpack.c.l.b16 %v3380
    %v3417 = vunpack.c.l.b16 %v3381
    %v3418 = vunpack.c.l.b16 %v3382
    %v3419 = vunpack.c.l.b16 %v3383
    %v3420 = vunpack.c.l.b16 %v3384
    %v3421 = vunpack.c.l.b16 %v3385
    %v3422 = vunpack.c.l.b16 %v3386
    %v3423 = vpack.c.b16 %v3408, %v3407
    %v3424 = vpack.c.b16 %v3410, %v3409
    %v3425 = vpack.c.b16 %v3412, %v3411
    %v3426 = vpack.c.b16 %v3414, %v3413
    %v3427 = vpack.c.b16 %v3416, %v3415
    %v3428 = vpack.c.b16 %v3418, %v3417
    %v3429 = vpack.c.b16 %v3420, %v3419
    %v3430 = vpack.c.b16 %v3422, %v3421
    %3439 = vmatpush.bf16.msra.mxu0 %v3430
    %3440 = vmatpush.bf16.msra.mxu0 %v3429
    %3441 = vmatpush.bf16.msra.mxu0 %v3428
    %3442 = vmatpush.bf16.msra.mxu0 %v3427
    %3443 = vmatpush.bf16.msra.mxu0 %v3426
    %3444 = vmatpush.bf16.msra.mxu0 %v3425
    %3445 = vmatpush.bf16.msra.mxu0 %v3424
    %3446 = vmatpush.bf16.msra.mxu0 %v3423
    %3447 = vmatmul.bf16.gmra.mxu0 %v3370
    %v3448 = vpop.f32.mrf.mxu0
    %v3449 = vadd.f32 %v3389, %v3448
    %v3450 = vpop.f32.mrf.mxu0
    %3451 = vdwg.mxu0
    %v3452 = vmax.f32 %v3449, 0.0
    %v3453 = vpack.c.bf16 %v3452, %v3452
    %v3454 = vld [vmem:[#allocation10] sm:$0xf]
    %v3455 = vld [vmem:[#allocation10 + $0x4] sm:$0xf]
    %v3456 = vld [vmem:[#allocation12] sm:$0x1]
    %v3458 = vperm.slane %v3456, 0
    %v3462 = vunpack.c.l.b16 %v3454
    %v3463 = vunpack.c.l.b16 %v3455
    %v3464 = vpack.c.b16 %v3463, %v3462
    %vm3466 = vcmask 130048
    %v3468 = vsel %vm3466, %v3453, 0
    %3470 = vmatpush.bf16.msra.mxu0 0
    %3471 = vmatpush.bf16.msra.mxu0 0
    %3472 = vmatpush.bf16.msra.mxu0 0
    %3473 = vmatpush.bf16.msra.mxu0 0
    %3474 = vmatpush.bf16.msra.mxu0 0
    %3475 = vmatpush.bf16.msra.mxu0 0
    %3476 = vmatpush.bf16.msra.mxu0 0
    %3477 = vmatpush.bf16.msra.mxu0 %v3464
    %3478 = vmatmul.bf16.gmra.mxu0 %v3468
    %v3479 = vpop.f32.mrf.mxu0
    %v3480 = vadd.f32 %v3458, %v3479
    %v3481 = vpop.f32.mrf.mxu0
    %3482 = vdwg.mxu0
    %3483 = vst [vmem:[%s9] sm:$0xff] %v3480
    // Predicated region
    $region66: #{net_forward.1} parent=1 // pred_check
      _
    $region67: #{net_forward.1} parent=1 // pred_check_branch
      %3485 = sbr.rel (0) target = $region69
    $region68: #{net_forward.1} parent=1 // pred_region
      _
    $region69: #{net_forward.1} parent=1 // pred_fallthru
      _
    // Predicated region
    $region70: #{net_forward.1} parent=1 // pred_check
      _
    $region71: #{net_forward.1} parent=1 // pred_check_branch
      %3487 = sbr.rel (0) target = $region73
    $region72: #{net_forward.1} parent=1 // pred_region
      _
    $region73: #{net_forward.1} parent=1 // pred_fallthru
      _
    %3488 = vsyncpa [#allocation3], 1
    %3489 = vsyncpa [#allocation5], 1
    %3490 = vsyncpa [#allocation8], 1
    %3491 = vsyncpa [#allocation11], 1

</llo_original>
